<compile_context>
chip_gen: v7x
topology: tpu7x:2x2x1
jax: 0.10.0
libtpu: 0.0.40
codegen_flags: <defaults>
</compile_context>

<pallas_src>
import functools

import jax
import jax.numpy as jnp
from jax.experimental import pallas as pl
from jax.experimental.pallas import tpu as pltpu


def _rel_attn_kernel(x_ref, xT_ref, rT_ref,
                     wqT_ref, wke_ref, wkr_ref,
                     bq_ref, bke_col_ref, bkr_col_ref,
                     uwke_ref, vwke_ref,
                     a_ref, b_ref, c_ref, d_ref,
                     kv_scr, *, heads):
    """Grid = (batch, query-tile).

    x_ref      : (1, TQ, C) bf16   query rows of x for this tile
    xT_ref     : (1, C, S)  bf16   x^T for this batch element (keys)
    rT_ref     : (1, C, S)  bf16   r^T for this batch element
    wqT_ref    : (C, C)     bf16   Wq^T  (so xq @ WqT == wq(xq))
    wke/wkr    : (C, C)     bf16   untransposed weights (W @ x^T == wke(x)^T)
    bq_ref     : (1, C) f32 ; bke_col/bkr_col : (C, 1) f32
    uwke/vwke  : (1, C) f32        hoisted wke(u), wkr(v)
    a_ref/b_ref: (1, H, TQ, S) f32 outputs
    c_ref/d_ref: (1, 1, S) f32     query-invariant rows
    kv_scr     : (C, 2S) bf16      [ewke^T | rwkr^T] cached per batch element
    """
    tq = x_ref.shape[1]
    C = xT_ref.shape[1]
    S = xT_ref.shape[2]
    H = heads
    CC = C // H
    qi = pl.program_id(1)

    # ---- once per batch element: key-side projections + global c/d rows ----
    @pl.when(qi == 0)
    def _init():
        # ewke^T = Wke @ x^T + bke  -> (C, S), produced directly transposed.
        ekT = (jnp.dot(wke_ref[...], xT_ref[0],
                       preferred_element_type=jnp.float32) + bke_col_ref[...])
        kv_scr[:, :S] = ekT.astype(kv_scr.dtype)
        # c[t] = sum_c uwke[c] * ewke[t, c]  (constant over the query axis)
        c_ref[0] = jnp.dot(uwke_ref[...], ekT,
                           preferred_element_type=jnp.float32)

        # rwkr^T = Wkr @ r^T + bkr  -> (C, S)
        rkT = (jnp.dot(wkr_ref[...], rT_ref[0],
                       preferred_element_type=jnp.float32) + bkr_col_ref[...])
        kv_scr[:, S:] = rkT.astype(kv_scr.dtype)
        d_ref[0] = jnp.dot(vwke_ref[...], rkT,
                           preferred_element_type=jnp.float32)

    # ---- per query tile: wq projection + fused per-head score matmuls ----
    ewq = (jnp.dot(x_ref[0], wqT_ref[...],
                   preferred_element_type=jnp.float32)
           + bq_ref[...]).astype(kv_scr.dtype)            # (TQ, C) bf16

    for h in range(H):
        lo = h * CC
        q_h = ewq[:, lo:lo + CC]                           # (TQ, CC) static slice
        # one MXU matmul per head produces both score blocks: (TQ, CC)x(CC, 2S)
        st = jnp.dot(q_h, kv_scr[lo:lo + CC, :],
                     preferred_element_type=jnp.float32)   # (TQ, 2S) f32
        a_ref[0, h] = st[:, :S]
        b_ref[0, h] = st[:, S:]


def _choose_tq(S, H, out_budget_bytes=8 * 1024 * 1024):
    """Largest TQ dividing S (multiple of 16) keeping the two double-buffered
    f32 (H, TQ, S) output blocks under out_budget_bytes."""
    if S % 8 != 0:
        return S
    tq = S
    while tq > 16 and 2 * 2 * H * tq * S * 4 > out_budget_bytes:
        nxt = tq // 2
        if nxt % 16 != 0 or S % nxt != 0:
            break
        tq = nxt
    return tq


def relative_spatial_attention(x, r, Wq, bq, Wke, bke, Wkr, bkr, u, v,
                               *, heads, tq=None):
    """Forward pass of RelativeSpatialAttention.

    x, r : (S, B, C) float32 (seq, batch, channels), as in the PyTorch module.

    Returns lane-dense outputs (use `to_module_layout` for 'stbn'/'stb'):
        a, b : (B, H, S, S)   a[b, n, s, t] == einsum('sbnc,tbnc->stbn')[s, t, b, n]
        c, d : (B, S)         c[b, t]       == einsum('sbc,tbc->stb')[s, t, b]  (any s)
    """
    S, B, C = x.shape
    H = heads
    assert C % H == 0
    f32, bf16 = jnp.float32, jnp.bfloat16

    # Batch-major + pre-transposed inputs; bf16 matmul operands (f32 accum in-kernel).
    x_bsc = jnp.transpose(x, (1, 0, 2)).astype(bf16)      # (B, S, C) query rows
    xT = jnp.transpose(x, (1, 2, 0)).astype(bf16)         # (B, C, S) key rows
    rT = jnp.transpose(r, (1, 2, 0)).astype(bf16)         # (B, C, S)

    wqT = Wq.T.astype(bf16)                               # (C, C)
    wke = Wke.astype(bf16)                                # (C, C) (untransposed)
    wkr = Wkr.astype(bf16)
    bq_row = bq.astype(f32)[None, :]                      # (1, C)
    bke_col = bke.astype(f32)[:, None]                    # (C, 1)
    bkr_col = bkr.astype(f32)[:, None]                    # (C, 1)

    # Hoisted batch-invariant projections (module: uwke = wke(u), vwke = wkr(v)).
    uwke = (u @ Wke.T + bke).astype(f32)[None, :]         # (1, C)
    vwke = (v @ Wkr.T + bkr).astype(f32)[None, :]         # (1, C)

    if tq is None:
        tq = _choose_tq(S, H)
    assert S % tq == 0 and (tq == S or tq % 8 == 0)
    num_q = S // tq

    def full(shape):
        return pl.BlockSpec(shape, lambda b, q, _n=len(shape): (0,) * _n)

    grid_spec = pltpu.PrefetchScalarGridSpec(
        num_scalar_prefetch=0,
        grid=(B, num_q),
        in_specs=[
            pl.BlockSpec((1, tq, C), lambda b, q: (b, q, 0)),   # x query tile
            pl.BlockSpec((1, C, S), lambda b, q: (b, 0, 0)),    # x^T
            pl.BlockSpec((1, C, S), lambda b, q: (b, 0, 0)),    # r^T
            full((C, C)), full((C, C)), full((C, C)),           # WqT, Wke, Wkr
            full((1, C)), full((C, 1)), full((C, 1)),           # bq, bke, bkr
            full((1, C)), full((1, C)),                         # uwke, vwke
        ],
        out_specs=[
            pl.BlockSpec((1, H, tq, S), lambda b, q: (b, 0, q, 0)),  # a
            pl.BlockSpec((1, H, tq, S), lambda b, q: (b, 0, q, 0)),  # b
            pl.BlockSpec((1, 1, S), lambda b, q: (b, 0, 0)),         # c row
            pl.BlockSpec((1, 1, S), lambda b, q: (b, 0, 0)),         # d row
        ],
        scratch_shapes=[pltpu.VMEM((C, 2 * S), bf16)],
    )

    out_shapes = (
        jax.ShapeDtypeStruct((B, H, S, S), f32),
        jax.ShapeDtypeStruct((B, H, S, S), f32),
        jax.ShapeDtypeStruct((B, 1, S), f32),
        jax.ShapeDtypeStruct((B, 1, S), f32),
    )

    a_t, b_t, c_t, d_t = pl.pallas_call(
        functools.partial(_rel_attn_kernel, heads=H),
        out_shape=out_shapes,
        grid_spec=grid_spec,
        compiler_params=pltpu.CompilerParams(
            dimension_semantics=("parallel", "arbitrary"),
            vmem_limit_bytes=48 * 1024 * 1024),
    )(x_bsc, xT, rT, wqT, wke, wkr, bq_row, bke_col, bkr_col, uwke, vwke)

    return a_t, b_t, c_t[:, 0, :], d_t[:, 0, :]


def to_module_layout(a, b, c, d):
    """Convert lane-dense kernel outputs to the PyTorch einsum layouts.

    a, b -> (S, S, B, H) ('stbn');  c, d -> (S, S, B) ('stb', constant over s).
    Only needed if a consumer requires the exact module layout.
    """
    S = a.shape[-1]
    B = c.shape[0]
    a_m = jnp.transpose(a, (2, 3, 0, 1))
    b_m = jnp.transpose(b, (2, 3, 0, 1))
    c_m = jnp.broadcast_to(c.T[None], (S, S, B))
    d_m = jnp.broadcast_to(d.T[None], (S, S, B))
    return a_m, b_m, c_m, d_m


def _reference(x, r, Wq, bq, Wke, bke, Wkr, bkr, u, v, heads):
    """Pure-JAX reference mirroring the PyTorch forward (same bf16 operand
    precision as the kernel, f32 accumulation)."""
    S, B, C = x.shape
    CC = C // heads
    bf16, f32 = jnp.bfloat16, jnp.float32

    def dot(a_, b_):
        return jnp.dot(a_.astype(bf16), b_.astype(bf16),
                       preferred_element_type=f32)

    ewq = (dot(x, Wq.T) + bq).reshape(S, B, heads, CC)
    ewke = (dot(x, Wke.T) + bke).reshape(S, B, heads, CC)
    rwkr = (dot(r, Wkr.T) + bkr).reshape(S, B, heads, CC)
    a = jnp.einsum('sbnc,tbnc->stbn', ewq.astype(bf16), ewke.astype(bf16),
                   preferred_element_type=f32)
    b_t = jnp.einsum('sbnc,tbnc->stbn', ewq.astype(bf16), rwkr.astype(bf16),
                     preferred_element_type=f32)
    uwke = u @ Wke.T + bke                                  # (C,)
    c_t = jnp.einsum('c,tbc->tb', uwke, ewke.reshape(S, B, C))
    c_t = jnp.broadcast_to(c_t[None], (S, S, B))
    vwke = v @ Wkr.T + bkr                                  # (module uses wkr on v)
    d_t = jnp.einsum('c,tbc->tb', vwke, rwkr.reshape(S, B, C))
    d_t = jnp.broadcast_to(d_t[None], (S, S, B))
    return a, b_t, c_t, d_t


if __name__ == "__main__":
    S, B, C, H = 32, 2, 64, 4
    key = jax.random.PRNGKey(0)
    ks = jax.random.split(key, 8)

    x = jax.random.normal(ks[0], (S, B, C), jnp.float32)
    r = jax.random.normal(ks[1], (S, B, C), jnp.float32)

    # Parameter shapes from __init__: three Linear(C, C) (weight (C,C), bias (C,))
    # and u, v initialized to zeros(C) as in the module.
    Wq = jax.random.normal(ks[2], (C, C), jnp.float32) * 0.1
    Wke = jax.random.normal(ks[3], (C, C), jnp.float32) * 0.1
    Wkr = jax.random.normal(ks[4], (C, C), jnp.float32) * 0.1
    bq = jax.random.normal(ks[5], (C,), jnp.float32) * 0.1
    bke = jax.random.normal(ks[6], (C,), jnp.float32) * 0.1
    bkr = jax.random.normal(ks[7], (C,), jnp.float32) * 0.1
    u = jnp.zeros((C,), jnp.float32)
    v = jnp.zeros((C,), jnp.float32)

    # tq=16 exercises the tiled query axis (2 query tiles per batch element).
    outs = relative_spatial_attention(x, r, Wq, bq, Wke, bke, Wkr, bkr, u, v,
                                      heads=H, tq=16)
    outs = jax.block_until_ready(outs)

    got = to_module_layout(*outs)
    refs = _reference(x, r, Wq, bq, Wke, bke, Wkr, bkr, u, v, H)
    for name, g, w in zip("abcd", got, refs):
        assert g.shape == w.shape, (name, g.shape, w.shape)
        err = float(jnp.max(jnp.abs(g - w)))
        assert err < 2e-2, (name, err)

    print("KERNEL_OK")
</pallas_src>

<mosaic_0001>
module attributes {stable_mosaic.version = 11 : i64} {
  func.func @_rel_attn_kernel(%arg0: i32, %arg1: i32, %arg2: memref<1x16x64xbf16, #tpu.memory_space<vmem>>, %arg3: memref<1x64x32xbf16, #tpu.memory_space<vmem>>, %arg4: memref<1x64x32xbf16, #tpu.memory_space<vmem>>, %arg5: memref<64x64xbf16, #tpu.memory_space<vmem>>, %arg6: memref<64x64xbf16, #tpu.memory_space<vmem>>, %arg7: memref<64x64xbf16, #tpu.memory_space<vmem>>, %arg8: memref<1x64xf32, #tpu.memory_space<vmem>>, %arg9: memref<64x1xf32, #tpu.memory_space<vmem>>, %arg10: memref<64x1xf32, #tpu.memory_space<vmem>>, %arg11: memref<1x64xf32, #tpu.memory_space<vmem>>, %arg12: memref<1x64xf32, #tpu.memory_space<vmem>>, %arg13: memref<1x4x16x32xf32, #tpu.memory_space<vmem>>, %arg14: memref<1x4x16x32xf32, #tpu.memory_space<vmem>>, %arg15: memref<1x1x32xf32, #tpu.memory_space<vmem>>, %arg16: memref<1x1x32xf32, #tpu.memory_space<vmem>>, %arg17: memref<64x64xbf16, #tpu.memory_space<vmem>>) attributes {dimension_semantics = [#tpu.dimension_semantics<parallel>, #tpu.dimension_semantics<arbitrary>], iteration_bounds = array<i64: 2, 2>, scalar_prefetch = 0 : i64, scratch_operands = 1 : i64, tpu.core_type = #tpu.core_type<tc>, window_params = [{transform_indices = @transform_0, window_bounds = array<i64: 1, 16, 64>}, {transform_indices = @transform_1, window_bounds = array<i64: 1, 64, 32>}, {transform_indices = @transform_2, window_bounds = array<i64: 1, 64, 32>}, {pipeline_mode = #tpu.pipeline_mode<synchronous>, transform_indices = @transform_3, window_bounds = array<i64: 64, 64>}, {pipeline_mode = #tpu.pipeline_mode<synchronous>, transform_indices = @transform_4, window_bounds = array<i64: 64, 64>}, {pipeline_mode = #tpu.pipeline_mode<synchronous>, transform_indices = @transform_5, window_bounds = array<i64: 64, 64>}, {pipeline_mode = #tpu.pipeline_mode<synchronous>, transform_indices = @transform_6, window_bounds = array<i64: 1, 64>}, {pipeline_mode = #tpu.pipeline_mode<synchronous>, transform_indices = @transform_7, window_bounds = array<i64: 64, 1>}, {pipeline_mode = #tpu.pipeline_mode<synchronous>, transform_indices = @transform_8, window_bounds = array<i64: 64, 1>}, {pipeline_mode = #tpu.pipeline_mode<synchronous>, transform_indices = @transform_9, window_bounds = array<i64: 1, 64>}, {pipeline_mode = #tpu.pipeline_mode<synchronous>, transform_indices = @transform_10, window_bounds = array<i64: 1, 64>}, {transform_indices = @transform_11, window_bounds = array<i64: 1, 4, 16, 32>}, {transform_indices = @transform_12, window_bounds = array<i64: 1, 4, 16, 32>}, {transform_indices = @transform_13, window_bounds = array<i64: 1, 1, 32>}, {transform_indices = @transform_14, window_bounds = array<i64: 1, 1, 32>}]} {
    %c0_i32 = arith.constant 0 : i32
    %0 = arith.cmpi eq, %arg1, %c0_i32 : i32
    %1 = arith.extui %0 : i1 to i32
    %c0_i32_0 = arith.constant 0 : i32
    %2 = arith.cmpi ne, %1, %c0_i32_0 : i32
    scf.if %2 {
      %c0_45 = arith.constant 0 : index
      %c0_46 = arith.constant 0 : index
      %55 = vector.load %arg6[%c0_45, %c0_46] : memref<64x64xbf16, #tpu.memory_space<vmem>>, vector<64x64xbf16>
      %c0_47 = arith.constant 0 : index
      %c0_48 = arith.constant 0 : index
      %c0_49 = arith.constant 0 : index
      %56 = vector.load %arg3[%c0_47, %c0_48, %c0_49] : memref<1x64x32xbf16, #tpu.memory_space<vmem>>, vector<1x64x32xbf16>
      %57 = vector.shape_cast %56 : vector<1x64x32xbf16> to vector<64x32xbf16>
      %cst_50 = arith.constant dense<0.000000e+00> : vector<64x32xf32>
      %58 = tpu.matmul %55, %57, %cst_50 {dimension_numbers = #tpu.dot_dimension_numbers<[1], [0], [0], [1], [0, 0, 1, 1], [], []>} : vector<64x64xbf16>, vector<64x32xbf16>, vector<64x32xf32> -> vector<64x32xf32>
      %c0_51 = arith.constant 0 : index
      %c0_52 = arith.constant 0 : index
      %59 = vector.load %arg9[%c0_51, %c0_52] : memref<64x1xf32, #tpu.memory_space<vmem>>, vector<64x1xf32>
      %60 = vector.broadcast %59 : vector<64x1xf32> to vector<64x32xf32>
      %61 = arith.addf %58, %60 : vector<64x32xf32>
      %62 = arith.truncf %61 : vector<64x32xf32> to vector<64x32xbf16>
      %c0_53 = arith.constant 0 : index
      %c0_54 = arith.constant 0 : index
      %63 = vector.load %arg17[%c0_53, %c0_54] : memref<64x64xbf16, #tpu.memory_space<vmem>>, vector<64x32xbf16>
      tpu.vector_store %arg17[%c0_53, %c0_54], %62 {strides = array<i32>} : memref<64x64xbf16, #tpu.memory_space<vmem>>, vector<64x32xbf16>,
      %c0_55 = arith.constant 0 : index
      %c0_56 = arith.constant 0 : index
      %64 = vector.load %arg11[%c0_55, %c0_56] : memref<1x64xf32, #tpu.memory_space<vmem>>, vector<1x64xf32>
      %cst_57 = arith.constant dense<0.000000e+00> : vector<1x32xf32>
      %65 = tpu.matmul %64, %61, %cst_57 {dimension_numbers = #tpu.dot_dimension_numbers<[1], [0], [0], [1], [0, 0, 1, 1], [], []>} : vector<1x64xf32>, vector<64x32xf32>, vector<1x32xf32> -> vector<1x32xf32>
      %c0_58 = arith.constant 0 : index
      %c0_59 = arith.constant 0 : index
      %c0_60 = arith.constant 0 : index
      %66 = vector.load %arg15[%c0_58, %c0_59, %c0_60] : memref<1x1x32xf32, #tpu.memory_space<vmem>>, vector<1x1x32xf32>
      %67 = vector.shape_cast %66 : vector<1x1x32xf32> to vector<1x32xf32>
      %68 = vector.shape_cast %65 : vector<1x32xf32> to vector<1x1x32xf32>
      tpu.vector_store %arg15[%c0_58, %c0_59, %c0_60], %68 {strides = array<i32>} : memref<1x1x32xf32, #tpu.memory_space<vmem>>, vector<1x1x32xf32>,
      %c0_61 = arith.constant 0 : index
      %c0_62 = arith.constant 0 : index
      %69 = vector.load %arg7[%c0_61, %c0_62] : memref<64x64xbf16, #tpu.memory_space<vmem>>, vector<64x64xbf16>
      %c0_63 = arith.constant 0 : index
      %c0_64 = arith.constant 0 : index
      %c0_65 = arith.constant 0 : index
      %70 = vector.load %arg4[%c0_63, %c0_64, %c0_65] : memref<1x64x32xbf16, #tpu.memory_space<vmem>>, vector<1x64x32xbf16>
      %71 = vector.shape_cast %70 : vector<1x64x32xbf16> to vector<64x32xbf16>
      %cst_66 = arith.constant dense<0.000000e+00> : vector<64x32xf32>
      %72 = tpu.matmul %69, %71, %cst_66 {dimension_numbers = #tpu.dot_dimension_numbers<[1], [0], [0], [1], [0, 0, 1, 1], [], []>} : vector<64x64xbf16>, vector<64x32xbf16>, vector<64x32xf32> -> vector<64x32xf32>
      %c0_67 = arith.constant 0 : index
      %c0_68 = arith.constant 0 : index
      %73 = vector.load %arg10[%c0_67, %c0_68] : memref<64x1xf32, #tpu.memory_space<vmem>>, vector<64x1xf32>
      %74 = vector.broadcast %73 : vector<64x1xf32> to vector<64x32xf32>
      %75 = arith.addf %72, %74 : vector<64x32xf32>
      %76 = arith.truncf %75 : vector<64x32xf32> to vector<64x32xbf16>
      %c0_69 = arith.constant 0 : index
      %c32_70 = arith.constant 32 : index
      %77 = vector.load %arg17[%c0_69, %c32_70] : memref<64x64xbf16, #tpu.memory_space<vmem>>, vector<64x32xbf16>
      tpu.vector_store %arg17[%c0_69, %c32_70], %76 {strides = array<i32>} : memref<64x64xbf16, #tpu.memory_space<vmem>>, vector<64x32xbf16>,
      %c0_71 = arith.constant 0 : index
      %c0_72 = arith.constant 0 : index
      %78 = vector.load %arg12[%c0_71, %c0_72] : memref<1x64xf32, #tpu.memory_space<vmem>>, vector<1x64xf32>
      %cst_73 = arith.constant dense<0.000000e+00> : vector<1x32xf32>
      %79 = tpu.matmul %78, %75, %cst_73 {dimension_numbers = #tpu.dot_dimension_numbers<[1], [0], [0], [1], [0, 0, 1, 1], [], []>} : vector<1x64xf32>, vector<64x32xf32>, vector<1x32xf32> -> vector<1x32xf32>
      %c0_74 = arith.constant 0 : index
      %c0_75 = arith.constant 0 : index
      %c0_76 = arith.constant 0 : index
      %80 = vector.load %arg16[%c0_74, %c0_75, %c0_76] : memref<1x1x32xf32, #tpu.memory_space<vmem>>, vector<1x1x32xf32>
      %81 = vector.shape_cast %80 : vector<1x1x32xf32> to vector<1x32xf32>
      %82 = vector.shape_cast %79 : vector<1x32xf32> to vector<1x1x32xf32>
      tpu.vector_store %arg16[%c0_74, %c0_75, %c0_76], %82 {strides = array<i32>} : memref<1x1x32xf32, #tpu.memory_space<vmem>>, vector<1x1x32xf32>,
    } else {
    }
    %c0 = arith.constant 0 : index
    %c0_1 = arith.constant 0 : index
    %c0_2 = arith.constant 0 : index
    %3 = vector.load %arg2[%c0, %c0_1, %c0_2] : memref<1x16x64xbf16, #tpu.memory_space<vmem>>, vector<1x16x64xbf16>
    %4 = vector.shape_cast %3 : vector<1x16x64xbf16> to vector<16x64xbf16>
    %c0_3 = arith.constant 0 : index
    %c0_4 = arith.constant 0 : index
    %5 = vector.load %arg5[%c0_3, %c0_4] : memref<64x64xbf16, #tpu.memory_space<vmem>>, vector<64x64xbf16>
    %cst = arith.constant dense<0.000000e+00> : vector<16x64xf32>
    %6 = tpu.matmul %4, %5, %cst {dimension_numbers = #tpu.dot_dimension_numbers<[1], [0], [0], [1], [0, 0, 1, 1], [], []>} : vector<16x64xbf16>, vector<64x64xbf16>, vector<16x64xf32> -> vector<16x64xf32>
    %c0_5 = arith.constant 0 : index
    %c0_6 = arith.constant 0 : index
    %7 = vector.load %arg8[%c0_5, %c0_6] : memref<1x64xf32, #tpu.memory_space<vmem>>, vector<1x64xf32>
    %8 = vector.broadcast %7 : vector<1x64xf32> to vector<16x64xf32>
    %9 = arith.addf %6, %8 : vector<16x64xf32>
    %10 = arith.truncf %9 : vector<16x64xf32> to vector<16x64xbf16>
    %11 = vector.extract_strided_slice %10 {offsets = [0, 0], sizes = [16, 16], strides = [1, 1]} : vector<16x64xbf16> to vector<16x16xbf16>
    %c0_7 = arith.constant 0 : index
    %c0_8 = arith.constant 0 : index
    %12 = vector.load %arg17[%c0_7, %c0_8] : memref<64x64xbf16, #tpu.memory_space<vmem>>, vector<16x64xbf16>
    %cst_9 = arith.constant dense<0.000000e+00> : vector<16x64xf32>
    %13 = tpu.matmul %11, %12, %cst_9 {dimension_numbers = #tpu.dot_dimension_numbers<[1], [0], [0], [1], [0, 0, 1, 1], [], []>} : vector<16x16xbf16>, vector<16x64xbf16>, vector<16x64xf32> -> vector<16x64xf32>
    %14 = vector.extract_strided_slice %13 {offsets = [0, 0], sizes = [16, 32], strides = [1, 1]} : vector<16x64xf32> to vector<16x32xf32>
    %c0_10 = arith.constant 0 : index
    %c0_11 = arith.constant 0 : index
    %c0_12 = arith.constant 0 : index
    %c0_13 = arith.constant 0 : index
    %15 = vector.load %arg13[%c0_10, %c0_11, %c0_12, %c0_13] : memref<1x4x16x32xf32, #tpu.memory_space<vmem>>, vector<1x1x16x32xf32>
    %16 = vector.shape_cast %15 : vector<1x1x16x32xf32> to vector<16x32xf32>
    %17 = vector.shape_cast %14 : vector<16x32xf32> to vector<1x1x16x32xf32>
    tpu.vector_store %arg13[%c0_10, %c0_11, %c0_12, %c0_13], %17 {strides = array<i32>} : memref<1x4x16x32xf32, #tpu.memory_space<vmem>>, vector<1x1x16x32xf32>,
    %18 = vector.extract_strided_slice %13 {offsets = [0, 32], sizes = [16, 32], strides = [1, 1]} : vector<16x64xf32> to vector<16x32xf32>
    %c0_14 = arith.constant 0 : index
    %c0_15 = arith.constant 0 : index
    %c0_16 = arith.constant 0 : index
    %c0_17 = arith.constant 0 : index
    %19 = vector.load %arg14[%c0_14, %c0_15, %c0_16, %c0_17] : memref<1x4x16x32xf32, #tpu.memory_space<vmem>>, vector<1x1x16x32xf32>
    %20 = vector.shape_cast %19 : vector<1x1x16x32xf32> to vector<16x32xf32>
    %21 = vector.shape_cast %18 : vector<16x32xf32> to vector<1x1x16x32xf32>
    tpu.vector_store %arg14[%c0_14, %c0_15, %c0_16, %c0_17], %21 {strides = array<i32>} : memref<1x4x16x32xf32, #tpu.memory_space<vmem>>, vector<1x1x16x32xf32>,
    %22 = vector.extract_strided_slice %10 {offsets = [0, 16], sizes = [16, 16], strides = [1, 1]} : vector<16x64xbf16> to vector<16x16xbf16>
    %c16 = arith.constant 16 : index
    %c0_18 = arith.constant 0 : index
    %23 = vector.load %arg17[%c16, %c0_18] : memref<64x64xbf16, #tpu.memory_space<vmem>>, vector<16x64xbf16>
    %cst_19 = arith.constant dense<0.000000e+00> : vector<16x64xf32>
    %24 = tpu.matmul %22, %23, %cst_19 {dimension_numbers = #tpu.dot_dimension_numbers<[1], [0], [0], [1], [0, 0, 1, 1], [], []>} : vector<16x16xbf16>, vector<16x64xbf16>, vector<16x64xf32> -> vector<16x64xf32>
    %25 = vector.extract_strided_slice %24 {offsets = [0, 0], sizes = [16, 32], strides = [1, 1]} : vector<16x64xf32> to vector<16x32xf32>
    %c0_20 = arith.constant 0 : index
    %c1 = arith.constant 1 : index
    %c0_21 = arith.constant 0 : index
    %c0_22 = arith.constant 0 : index
    %26 = vector.load %arg13[%c0_20, %c1, %c0_21, %c0_22] : memref<1x4x16x32xf32, #tpu.memory_space<vmem>>, vector<1x1x16x32xf32>
    %27 = vector.shape_cast %26 : vector<1x1x16x32xf32> to vector<16x32xf32>
    %28 = vector.shape_cast %25 : vector<16x32xf32> to vector<1x1x16x32xf32>
    tpu.vector_store %arg13[%c0_20, %c1, %c0_21, %c0_22], %28 {strides = array<i32>} : memref<1x4x16x32xf32, #tpu.memory_space<vmem>>, vector<1x1x16x32xf32>,
    %29 = vector.extract_strided_slice %24 {offsets = [0, 32], sizes = [16, 32], strides = [1, 1]} : vector<16x64xf32> to vector<16x32xf32>
    %c0_23 = arith.constant 0 : index
    %c1_24 = arith.constant 1 : index
    %c0_25 = arith.constant 0 : index
    %c0_26 = arith.constant 0 : index
    %30 = vector.load %arg14[%c0_23, %c1_24, %c0_25, %c0_26] : memref<1x4x16x32xf32, #tpu.memory_space<vmem>>, vector<1x1x16x32xf32>
    %31 = vector.shape_cast %30 : vector<1x1x16x32xf32> to vector<16x32xf32>
    %32 = vector.shape_cast %29 : vector<16x32xf32> to vector<1x1x16x32xf32>
    tpu.vector_store %arg14[%c0_23, %c1_24, %c0_25, %c0_26], %32 {strides = array<i32>} : memref<1x4x16x32xf32, #tpu.memory_space<vmem>>, vector<1x1x16x32xf32>,
    %33 = vector.extract_strided_slice %10 {offsets = [0, 32], sizes = [16, 16], strides = [1, 1]} : vector<16x64xbf16> to vector<16x16xbf16>
    %c32 = arith.constant 32 : index
    %c0_27 = arith.constant 0 : index
    %34 = vector.load %arg17[%c32, %c0_27] : memref<64x64xbf16, #tpu.memory_space<vmem>>, vector<16x64xbf16>
    %cst_28 = arith.constant dense<0.000000e+00> : vector<16x64xf32>
    %35 = tpu.matmul %33, %34, %cst_28 {dimension_numbers = #tpu.dot_dimension_numbers<[1], [0], [0], [1], [0, 0, 1, 1], [], []>} : vector<16x16xbf16>, vector<16x64xbf16>, vector<16x64xf32> -> vector<16x64xf32>
    %36 = vector.extract_strided_slice %35 {offsets = [0, 0], sizes = [16, 32], strides = [1, 1]} : vector<16x64xf32> to vector<16x32xf32>
    %c0_29 = arith.constant 0 : index
    %c2 = arith.constant 2 : index
    %c0_30 = arith.constant 0 : index
    %c0_31 = arith.constant 0 : index
    %37 = vector.load %arg13[%c0_29, %c2, %c0_30, %c0_31] : memref<1x4x16x32xf32, #tpu.memory_space<vmem>>, vector<1x1x16x32xf32>
    %38 = vector.shape_cast %37 : vector<1x1x16x32xf32> to vector<16x32xf32>
    %39 = vector.shape_cast %36 : vector<16x32xf32> to vector<1x1x16x32xf32>
    tpu.vector_store %arg13[%c0_29, %c2, %c0_30, %c0_31], %39 {strides = array<i32>} : memref<1x4x16x32xf32, #tpu.memory_space<vmem>>, vector<1x1x16x32xf32>,
    %40 = vector.extract_strided_slice %35 {offsets = [0, 32], sizes = [16, 32], strides = [1, 1]} : vector<16x64xf32> to vector<16x32xf32>
    %c0_32 = arith.constant 0 : index
    %c2_33 = arith.constant 2 : index
    %c0_34 = arith.constant 0 : index
    %c0_35 = arith.constant 0 : index
    %41 = vector.load %arg14[%c0_32, %c2_33, %c0_34, %c0_35] : memref<1x4x16x32xf32, #tpu.memory_space<vmem>>, vector<1x1x16x32xf32>
    %42 = vector.shape_cast %41 : vector<1x1x16x32xf32> to vector<16x32xf32>
    %43 = vector.shape_cast %40 : vector<16x32xf32> to vector<1x1x16x32xf32>
    tpu.vector_store %arg14[%c0_32, %c2_33, %c0_34, %c0_35], %43 {strides = array<i32>} : memref<1x4x16x32xf32, #tpu.memory_space<vmem>>, vector<1x1x16x32xf32>,
    %44 = vector.extract_strided_slice %10 {offsets = [0, 48], sizes = [16, 16], strides = [1, 1]} : vector<16x64xbf16> to vector<16x16xbf16>
    %c48 = arith.constant 48 : index
    %c0_36 = arith.constant 0 : index
    %45 = vector.load %arg17[%c48, %c0_36] : memref<64x64xbf16, #tpu.memory_space<vmem>>, vector<16x64xbf16>
    %cst_37 = arith.constant dense<0.000000e+00> : vector<16x64xf32>
    %46 = tpu.matmul %44, %45, %cst_37 {dimension_numbers = #tpu.dot_dimension_numbers<[1], [0], [0], [1], [0, 0, 1, 1], [], []>} : vector<16x16xbf16>, vector<16x64xbf16>, vector<16x64xf32> -> vector<16x64xf32>
    %47 = vector.extract_strided_slice %46 {offsets = [0, 0], sizes = [16, 32], strides = [1, 1]} : vector<16x64xf32> to vector<16x32xf32>
    %c0_38 = arith.constant 0 : index
    %c3 = arith.constant 3 : index
    %c0_39 = arith.constant 0 : index
    %c0_40 = arith.constant 0 : index
    %48 = vector.load %arg13[%c0_38, %c3, %c0_39, %c0_40] : memref<1x4x16x32xf32, #tpu.memory_space<vmem>>, vector<1x1x16x32xf32>
    %49 = vector.shape_cast %48 : vector<1x1x16x32xf32> to vector<16x32xf32>
    %50 = vector.shape_cast %47 : vector<16x32xf32> to vector<1x1x16x32xf32>
    tpu.vector_store %arg13[%c0_38, %c3, %c0_39, %c0_40], %50 {strides = array<i32>} : memref<1x4x16x32xf32, #tpu.memory_space<vmem>>, vector<1x1x16x32xf32>,
    %51 = vector.extract_strided_slice %46 {offsets = [0, 32], sizes = [16, 32], strides = [1, 1]} : vector<16x64xf32> to vector<16x32xf32>
    %c0_41 = arith.constant 0 : index
    %c3_42 = arith.constant 3 : index
    %c0_43 = arith.constant 0 : index
    %c0_44 = arith.constant 0 : index
    %52 = vector.load %arg14[%c0_41, %c3_42, %c0_43, %c0_44] : memref<1x4x16x32xf32, #tpu.memory_space<vmem>>, vector<1x1x16x32xf32>
    %53 = vector.shape_cast %52 : vector<1x1x16x32xf32> to vector<16x32xf32>
    %54 = vector.shape_cast %51 : vector<16x32xf32> to vector<1x1x16x32xf32>
    tpu.vector_store %arg14[%c0_41, %c3_42, %c0_43, %c0_44], %54 {strides = array<i32>} : memref<1x4x16x32xf32, #tpu.memory_space<vmem>>, vector<1x1x16x32xf32>,
    return
  }
  func.func @transform_0(%arg0: i32, %arg1: i32) -> (i32, i32, i32) {
    %c0_i32 = arith.constant 0 : i32
    %c0_i32_0 = arith.constant 0 : i32
    return %arg0, %arg1, %c0_i32 : i32, i32, i32
  }
  func.func @transform_1(%arg0: i32, %arg1: i32) -> (i32, i32, i32) {
    %c0_i32 = arith.constant 0 : i32
    %c0_i32_0 = arith.constant 0 : i32
    %c0_i32_1 = arith.constant 0 : i32
    return %arg0, %c0_i32, %c0_i32_0 : i32, i32, i32
  }
  func.func @transform_2(%arg0: i32, %arg1: i32) -> (i32, i32, i32) {
    %c0_i32 = arith.constant 0 : i32
    %c0_i32_0 = arith.constant 0 : i32
    %c0_i32_1 = arith.constant 0 : i32
    return %arg0, %c0_i32, %c0_i32_0 : i32, i32, i32
  }
  func.func @transform_3(%arg0: i32, %arg1: i32) -> (i32, i32) {
    %c0_i32 = arith.constant 0 : i32
    %c0_i32_0 = arith.constant 0 : i32
    %c0_i32_1 = arith.constant 0 : i32
    return %c0_i32, %c0_i32_0 : i32, i32
  }
  func.func @transform_4(%arg0: i32, %arg1: i32) -> (i32, i32) {
    %c0_i32 = arith.constant 0 : i32
    %c0_i32_0 = arith.constant 0 : i32
    %c0_i32_1 = arith.constant 0 : i32
    return %c0_i32, %c0_i32_0 : i32, i32
  }
  func.func @transform_5(%arg0: i32, %arg1: i32) -> (i32, i32) {
    %c0_i32 = arith.constant 0 : i32
    %c0_i32_0 = arith.constant 0 : i32
    %c0_i32_1 = arith.constant 0 : i32
    return %c0_i32, %c0_i32_0 : i32, i32
  }
  func.func @transform_6(%arg0: i32, %arg1: i32) -> (i32, i32) {
    %c0_i32 = arith.constant 0 : i32
    %c0_i32_0 = arith.constant 0 : i32
    %c0_i32_1 = arith.constant 0 : i32
    return %c0_i32, %c0_i32_0 : i32, i32
  }
  func.func @transform_7(%arg0: i32, %arg1: i32) -> (i32, i32) {
    %c0_i32 = arith.constant 0 : i32
    %c0_i32_0 = arith.constant 0 : i32
    %c0_i32_1 = arith.constant 0 : i32
    return %c0_i32, %c0_i32_0 : i32, i32
  }
  func.func @transform_8(%arg0: i32, %arg1: i32) -> (i32, i32) {
    %c0_i32 = arith.constant 0 : i32
    %c0_i32_0 = arith.constant 0 : i32
    %c0_i32_1 = arith.constant 0 : i32
    return %c0_i32, %c0_i32_0 : i32, i32
  }
  func.func @transform_9(%arg0: i32, %arg1: i32) -> (i32, i32) {
    %c0_i32 = arith.constant 0 : i32
    %c0_i32_0 = arith.constant 0 : i32
    %c0_i32_1 = arith.constant 0 : i32
    return %c0_i32, %c0_i32_0 : i32, i32
  }
  func.func @transform_10(%arg0: i32, %arg1: i32) -> (i32, i32) {
    %c0_i32 = arith.constant 0 : i32
    %c0_i32_0 = arith.constant 0 : i32
    %c0_i32_1 = arith.constant 0 : i32
    return %c0_i32, %c0_i32_0 : i32, i32
  }
  func.func @transform_11(%arg0: i32, %arg1: i32) -> (i32, i32, i32, i32) {
    %c0_i32 = arith.constant 0 : i32
    %c0_i32_0 = arith.constant 0 : i32
    %c0_i32_1 = arith.constant 0 : i32
    return %arg0, %c0_i32, %arg1, %c0_i32_0 : i32, i32, i32, i32
  }
  func.func @transform_12(%arg0: i32, %arg1: i32) -> (i32, i32, i32, i32) {
    %c0_i32 = arith.constant 0 : i32
    %c0_i32_0 = arith.constant 0 : i32
    %c0_i32_1 = arith.constant 0 : i32
    return %arg0, %c0_i32, %arg1, %c0_i32_0 : i32, i32, i32, i32
  }
  func.func @transform_13(%arg0: i32, %arg1: i32) -> (i32, i32, i32) {
    %c0_i32 = arith.constant 0 : i32
    %c0_i32_0 = arith.constant 0 : i32
    %c0_i32_1 = arith.constant 0 : i32
    return %arg0, %c0_i32, %c0_i32_0 : i32, i32, i32
  }
  func.func @transform_14(%arg0: i32, %arg1: i32) -> (i32, i32, i32) {
    %c0_i32 = arith.constant 0 : i32
    %c0_i32_0 = arith.constant 0 : i32
    %c0_i32_1 = arith.constant 0 : i32
    return %arg0, %c0_i32, %c0_i32_0 : i32, i32, i32
  }
}

</mosaic_0001>

<llo_original>
// kernel: tpu_custom_call.1
$region0: #{tpu_custom_call.1}
  #allocation0 [shape = 'u32[]', space=smem, size = 0x4, offset = 0x4, fixed_abs, tag = 'smem constant byte address 0x4 - core index']
  #allocation1 [shape = 'u32[144,128]{1,0:T(1,128)}', space=vmem, size = 0x12000, scoped, tag = 'internal scratch']
  #allocation2 [shape = 'bf16[64,64]{1,0:T(16,128)(2,1)}', space=vmem, size = 0x4000, scoped, tag = 'scratch operand']
  #allocation10 [shape = 's32[]', space=sflag, size = 0x4, offset = 0, fixed_abs, tag = 'sflag constant byte address 0x0 - dummy sync flag']
  #allocation12 [shape = 's32[]', space=sflag, size = 0x4, offset = 0, fixed_abs, tag = 'sflag constant byte address 0x0 - dummy sync flag']
  %s0 = inlined_call_operand.vmem [shape: bf16[2,32,64], index: 0, kind: input, shape index: {}]
  %s1 = inlined_call_operand.vmem [shape: bf16[2,64,32], index: 1, kind: input, shape index: {}]
  %s2 = inlined_call_operand.vmem [shape: bf16[2,64,32], index: 2, kind: input, shape index: {}]
  %s3 = inlined_call_operand.vmem [shape: bf16[64,64], index: 3, kind: input, shape index: {}]
  %s4 = inlined_call_operand.vmem [shape: bf16[64,64], index: 4, kind: input, shape index: {}]
  %s5 = inlined_call_operand.vmem [shape: bf16[64,64], index: 5, kind: input, shape index: {}]
  %s6 = inlined_call_operand.vmem [shape: f32[1,64], index: 6, kind: input, shape index: {}]
  %s7 = inlined_call_operand.vmem [shape: f32[64,1], index: 7, kind: input, shape index: {}]
  %s8 = inlined_call_operand.vmem [shape: f32[64,1], index: 8, kind: input, shape index: {}]
  %s9 = inlined_call_operand.vmem [shape: f32[1,64], index: 9, kind: input, shape index: {}]
  %s10 = inlined_call_operand.vmem [shape: f32[1,64], index: 10, kind: input, shape index: {}]
  %s11 = inlined_call_operand.hbm [shape: f32[2,4,32,32], index: 11, kind: output, shape index: {0}]
  %s12 = inlined_call_operand.hbm [shape: f32[2,4,32,32], index: 12, kind: output, shape index: {1}]
  %s13 = inlined_call_operand.hbm [shape: f32[2,1,32], index: 13, kind: output, shape index: {2}]
  %s14 = inlined_call_operand.hbm [shape: f32[2,1,32], index: 14, kind: output, shape index: {3}]
  %15 = xla_tuple %s11, %s12, %s13, %s14
  %s16 = sld [smem:[#allocation0]]
  $region105: #{tpu_custom_call.1} parent=0
    _
  %s18 = ssub.s32 1, %s16
  %s19 = scalar_select 0, %s18, %s16
  $region1: #{tpu_custom_call.1} parent=0
    #allocation3 [shape = 'u8[65536]{0}', space=vmem, size = 0x10000, scoped, tag = 'output window, operand 0']
    #allocation4 [shape = 's32[2]{0}', space=sflag, size = 0x8, scoped, tag = 'scoped memory for tpu_custom_call.1']
    #allocation5 [shape = 'u8[65536]{0}', space=vmem, size = 0x10000, scoped, tag = 'output window, operand 1']
    #allocation6 [shape = 's32[2]{0}', space=sflag, size = 0x8, scoped, tag = 'scoped memory for tpu_custom_call.1']
    #allocation7 [shape = 'u8[1024]{0}', space=vmem, size = 0x400, scoped, tag = 'output window, operand 2']
    #allocation8 [shape = 'u8[1024]{0}', space=vmem, size = 0x400, scoped, tag = 'output window, operand 3']
    #allocation9 [shape = 's32[2]{0}', space=sflag, size = 0x8, scoped, tag = 'scoped memory for tpu_custom_call.1']
    %20 = vsyncpa [#allocation4], 0
    %s21 = scalar_lea.sflag [#allocation4], 1
    %22 = vsyncpa %s21, 0
    %23 = vsyncpa [#allocation6], 0
    %s24 = scalar_lea.sflag [#allocation6], 1
    %25 = vsyncpa %s24, 0
    %26 = vsyncpa [#allocation9], 0
    %s27 = scalar_lea.sflag [#allocation9], 1
    %28 = vsyncpa %s27, 0
    loop: start=0, step=1, limit=6
    $region2: #{tpu_custom_call.1} parent=1 // loop_pre_header
      _
    $region3: #{tpu_custom_call.1} parent=1 // loop_header
      %s30 = sphi 0, %s34
      %p31 = scmp.ge.s32.totalorder %s30, 6
      %s37 = sphi 0, %s49
      %s38 = sphi 0, %s45
      %s39 = sphi 0, %s37
      %s40 = sphi 0, %s38
      %s41 = sphi 0, %s39
      %s42 = sphi 0, %s40
      %s54 = sphi 0, %s56
      %s57 = sphi 0, %s54
      %s58 = sphi 0, %s57
      %s74 = sphi 0, %s58
      %s80 = sphi 0, %s82
      %s83 = sphi 0, %s80
      %s84 = sphi 0, %s83
      %s100 = sphi 0, %s84
      %s106 = sphi 0, %s108
      %s109 = sphi 0, %s106
      %s110 = sphi 0, %s109
      %s126 = sphi 0, %s110
      %s130 = sphi 0, %s130
      %s132 = sphi 0, %s130
      %s133 = sphi 0, %s132
      %s147 = sphi 0, %s133
      %s151 = sphi 0, %s151
      %s153 = sphi 0, %s151
      %s154 = sphi 0, %s153
      %s168 = sphi 0, %s154
      %s172 = sphi 0, %s172
      %s174 = sphi 0, %s172
      %s175 = sphi 0, %s174
      %s189 = sphi 0, %s175
      %s193 = sphi 0, %s193
      %s195 = sphi 0, %s193
      %s196 = sphi 0, %s195
      %s210 = sphi 0, %s196
      %s214 = sphi 0, %s214
      %s216 = sphi 0, %s214
      %s217 = sphi 0, %s216
      %s231 = sphi 0, %s217
      %s235 = sphi 0, %s235
      %s237 = sphi 0, %s235
      %s238 = sphi 0, %s237
      %s252 = sphi 0, %s238
      %s256 = sphi 0, %s256
      %s258 = sphi 0, %s256
      %s259 = sphi 0, %s258
      %s273 = sphi 0, %s259
      %s277 = sphi 0, %s277
      %s279 = sphi 0, %s277
      %s280 = sphi 0, %s279
      %s294 = sphi 0, %s280
      %s302 = sphi 0, %s304
      %s305 = sphi 0, %s302
      %s306 = sphi 0, %s305
      %s322 = sphi 0, %s306
      %s330 = sphi 0, %s332
      %s333 = sphi 0, %s330
      %s334 = sphi 0, %s333
      %s350 = sphi 0, %s334
      %s356 = sphi 0, %s358
      %s359 = sphi 0, %s356
      %s360 = sphi 0, %s359
      %s376 = sphi 0, %s360
      %s382 = sphi 0, %s384
      %s385 = sphi 0, %s382
      %s386 = sphi 0, %s385
      %s402 = sphi 0, %s386
    $region4: #{tpu_custom_call.1} parent=1 // loop_header_branch
      %33 = sbr.rel (%p31) target = $region8
    $region5: #{tpu_custom_call.1} parent=1 // loop_body
      %s35 = ssub.s32 %s30, 1
      %s36 = ssub.s32 %s30, 2
      %s43 = sadd.s32 1, %s38
      %p44 = scmp.ge.s32.totalorder %s43, 2
      %s45 = scalar_select %p44, 0, %s43
      %s46 = sadd.s32 1, %s37
      %s47 = scalar_select %p44, %s46, %s37
      %p48 = scmp.ge.s32.totalorder %s47, 2
      %s49 = scalar_select %p48, 0, %s47
      %s50 = ssub.s32 %s37, %s49
      %s51 = ssub.s32 %s38, %s45
      %s52 = sor.u32 %s50, %s51
      %p53 = scmp.eq.s32.totalorder %s52, 0
      %s55 = sadd.s32 %s54, 1
      %s56 = scalar_select %p53, %s54, %s55
      %p59 = pneg %p53
      %p60 = scmp.eq.s32.totalorder %s30, 3
      %p61 = por %p59, %p60
      %p62 = scmp.ne.s32.totalorder %s54, %s57
      %p63 = scmp.eq.s32.totalorder %s30, 0
      %p64 = por %p62, %p63
      %p65 = scmp.ne.s32.totalorder %s54, %s57
      %p66 = scmp.eq.s32.totalorder %s35, 3
      %p67 = por %p65, %p66
      %p68 = scmp.ne.s32.totalorder %s57, %s58
      %p69 = scmp.eq.s32.totalorder %s35, 0
      %p70 = por %p68, %p69
      %p71 = scmp.ne.s32.totalorder %s57, %s58
      %p72 = scmp.eq.s32.totalorder %s36, 3
      %p73 = por %p71, %p72
      %p75 = scmp.ne.s32.totalorder %s58, %s74
      %p76 = scmp.eq.s32.totalorder %s36, 0
      %p77 = por %p75, %p76
      %s78 = ssub.s32 %s37, %s49
      %p79 = scmp.eq.s32.totalorder %s78, 0
      %s81 = sadd.s32 %s80, 1
      %s82 = scalar_select %p79, %s80, %s81
      %p85 = pneg %p79
      %p86 = scmp.eq.s32.totalorder %s30, 3
      %p87 = por %p85, %p86
      %p88 = scmp.ne.s32.totalorder %s80, %s83
      %p89 = scmp.eq.s32.totalorder %s30, 0
      %p90 = por %p88, %p89
      %p91 = scmp.ne.s32.totalorder %s80, %s83
      %p92 = scmp.eq.s32.totalorder %s35, 3
      %p93 = por %p91, %p92
      %p94 = scmp.ne.s32.totalorder %s83, %s84
      %p95 = scmp.eq.s32.totalorder %s35, 0
      %p96 = por %p94, %p95
      %p97 = scmp.ne.s32.totalorder %s83, %s84
      %p98 = scmp.eq.s32.totalorder %s36, 3
      %p99 = por %p97, %p98
      %p101 = scmp.ne.s32.totalorder %s84, %s100
      %p102 = scmp.eq.s32.totalorder %s36, 0
      %p103 = por %p101, %p102
      %s104 = ssub.s32 %s37, %s49
      %p105 = scmp.eq.s32.totalorder %s104, 0
      %s107 = sadd.s32 %s106, 1
      %s108 = scalar_select %p105, %s106, %s107
      %p111 = pneg %p105
      %p112 = scmp.eq.s32.totalorder %s30, 3
      %p113 = por %p111, %p112
      %p114 = scmp.ne.s32.totalorder %s106, %s109
      %p115 = scmp.eq.s32.totalorder %s30, 0
      %p116 = por %p114, %p115
      %p117 = scmp.ne.s32.totalorder %s106, %s109
      %p118 = scmp.eq.s32.totalorder %s35, 3
      %p119 = por %p117, %p118
      %p120 = scmp.ne.s32.totalorder %s109, %s110
      %p121 = scmp.eq.s32.totalorder %s35, 0
      %p122 = por %p120, %p121
      %p123 = scmp.ne.s32.totalorder %s109, %s110
      %p124 = scmp.eq.s32.totalorder %s36, 3
      %p125 = por %p123, %p124
      %p127 = scmp.ne.s32.totalorder %s110, %s126
      %p128 = scmp.eq.s32.totalorder %s36, 0
      %p129 = por %p127, %p128
      %s131 = sadd.s32 %s130, 1
      %p134 = scmp.eq.s32.totalorder %s30, 3
      %p135 = scmp.ne.s32.totalorder %s130, %s132
      %p136 = scmp.eq.s32.totalorder %s30, 0
      %p137 = por %p135, %p136
      %p138 = scmp.ne.s32.totalorder %s130, %s132
      %p139 = scmp.eq.s32.totalorder %s35, 3
      %p140 = por %p138, %p139
      %p141 = scmp.ne.s32.totalorder %s132, %s133
      %p142 = scmp.eq.s32.totalorder %s35, 0
      %p143 = por %p141, %p142
      %p144 = scmp.ne.s32.totalorder %s132, %s133
      %p145 = scmp.eq.s32.totalorder %s36, 3
      %p146 = por %p144, %p145
      %p148 = scmp.ne.s32.totalorder %s133, %s147
      %p149 = scmp.eq.s32.totalorder %s36, 0
      %p150 = por %p148, %p149
      %s152 = sadd.s32 %s151, 1
      %p155 = scmp.eq.s32.totalorder %s30, 3
      %p156 = scmp.ne.s32.totalorder %s151, %s153
      %p157 = scmp.eq.s32.totalorder %s30, 0
      %p158 = por %p156, %p157
      %p159 = scmp.ne.s32.totalorder %s151, %s153
      %p160 = scmp.eq.s32.totalorder %s35, 3
      %p161 = por %p159, %p160
      %p162 = scmp.ne.s32.totalorder %s153, %s154
      %p163 = scmp.eq.s32.totalorder %s35, 0
      %p164 = por %p162, %p163
      %p165 = scmp.ne.s32.totalorder %s153, %s154
      %p166 = scmp.eq.s32.totalorder %s36, 3
      %p167 = por %p165, %p166
      %p169 = scmp.ne.s32.totalorder %s154, %s168
      %p170 = scmp.eq.s32.totalorder %s36, 0
      %p171 = por %p169, %p170
      %s173 = sadd.s32 %s172, 1
      %p176 = scmp.eq.s32.totalorder %s30, 3
      %p177 = scmp.ne.s32.totalorder %s172, %s174
      %p178 = scmp.eq.s32.totalorder %s30, 0
      %p179 = por %p177, %p178
      %p180 = scmp.ne.s32.totalorder %s172, %s174
      %p181 = scmp.eq.s32.totalorder %s35, 3
      %p182 = por %p180, %p181
      %p183 = scmp.ne.s32.totalorder %s174, %s175
      %p184 = scmp.eq.s32.totalorder %s35, 0
      %p185 = por %p183, %p184
      %p186 = scmp.ne.s32.totalorder %s174, %s175
      %p187 = scmp.eq.s32.totalorder %s36, 3
      %p188 = por %p186, %p187
      %p190 = scmp.ne.s32.totalorder %s175, %s189
      %p191 = scmp.eq.s32.totalorder %s36, 0
      %p192 = por %p190, %p191
      %s194 = sadd.s32 %s193, 1
      %p197 = scmp.eq.s32.totalorder %s30, 3
      %p198 = scmp.ne.s32.totalorder %s193, %s195
      %p199 = scmp.eq.s32.totalorder %s30, 0
      %p200 = por %p198, %p199
      %p201 = scmp.ne.s32.totalorder %s193, %s195
      %p202 = scmp.eq.s32.totalorder %s35, 3
      %p203 = por %p201, %p202
      %p204 = scmp.ne.s32.totalorder %s195, %s196
      %p205 = scmp.eq.s32.totalorder %s35, 0
      %p206 = por %p204, %p205
      %p207 = scmp.ne.s32.totalorder %s195, %s196
      %p208 = scmp.eq.s32.totalorder %s36, 3
      %p209 = por %p207, %p208
      %p211 = scmp.ne.s32.totalorder %s196, %s210
      %p212 = scmp.eq.s32.totalorder %s36, 0
      %p213 = por %p211, %p212
      %s215 = sadd.s32 %s214, 1
      %p218 = scmp.eq.s32.totalorder %s30, 3
      %p219 = scmp.ne.s32.totalorder %s214, %s216
      %p220 = scmp.eq.s32.totalorder %s30, 0
      %p221 = por %p219, %p220
      %p222 = scmp.ne.s32.totalorder %s214, %s216
      %p223 = scmp.eq.s32.totalorder %s35, 3
      %p224 = por %p222, %p223
      %p225 = scmp.ne.s32.totalorder %s216, %s217
      %p226 = scmp.eq.s32.totalorder %s35, 0
      %p227 = por %p225, %p226
      %p228 = scmp.ne.s32.totalorder %s216, %s217
      %p229 = scmp.eq.s32.totalorder %s36, 3
      %p230 = por %p228, %p229
      %p232 = scmp.ne.s32.totalorder %s217, %s231
      %p233 = scmp.eq.s32.totalorder %s36, 0
      %p234 = por %p232, %p233
      %s236 = sadd.s32 %s235, 1
      %p239 = scmp.eq.s32.totalorder %s30, 3
      %p240 = scmp.ne.s32.totalorder %s235, %s237
      %p241 = scmp.eq.s32.totalorder %s30, 0
      %p242 = por %p240, %p241
      %p243 = scmp.ne.s32.totalorder %s235, %s237
      %p244 = scmp.eq.s32.totalorder %s35, 3
      %p245 = por %p243, %p244
      %p246 = scmp.ne.s32.totalorder %s237, %s238
      %p247 = scmp.eq.s32.totalorder %s35, 0
      %p248 = por %p246, %p247
      %p249 = scmp.ne.s32.totalorder %s237, %s238
      %p250 = scmp.eq.s32.totalorder %s36, 3
      %p251 = por %p249, %p250
      %p253 = scmp.ne.s32.totalorder %s238, %s252
      %p254 = scmp.eq.s32.totalorder %s36, 0
      %p255 = por %p253, %p254
      %s257 = sadd.s32 %s256, 1
      %p260 = scmp.eq.s32.totalorder %s30, 3
      %p261 = scmp.ne.s32.totalorder %s256, %s258
      %p262 = scmp.eq.s32.totalorder %s30, 0
      %p263 = por %p261, %p262
      %p264 = scmp.ne.s32.totalorder %s256, %s258
      %p265 = scmp.eq.s32.totalorder %s35, 3
      %p266 = por %p264, %p265
      %p267 = scmp.ne.s32.totalorder %s258, %s259
      %p268 = scmp.eq.s32.totalorder %s35, 0
      %p269 = por %p267, %p268
      %p270 = scmp.ne.s32.totalorder %s258, %s259
      %p271 = scmp.eq.s32.totalorder %s36, 3
      %p272 = por %p270, %p271
      %p274 = scmp.ne.s32.totalorder %s259, %s273
      %p275 = scmp.eq.s32.totalorder %s36, 0
      %p276 = por %p274, %p275
      %s278 = sadd.s32 %s277, 1
      %p281 = scmp.eq.s32.totalorder %s30, 3
      %p282 = scmp.ne.s32.totalorder %s277, %s279
      %p283 = scmp.eq.s32.totalorder %s30, 0
      %p284 = por %p282, %p283
      %p285 = scmp.ne.s32.totalorder %s277, %s279
      %p286 = scmp.eq.s32.totalorder %s35, 3
      %p287 = por %p285, %p286
      %p288 = scmp.ne.s32.totalorder %s279, %s280
      %p289 = scmp.eq.s32.totalorder %s35, 0
      %p290 = por %p288, %p289
      %p291 = scmp.ne.s32.totalorder %s279, %s280
      %p292 = scmp.eq.s32.totalorder %s36, 3
      %p293 = por %p291, %p292
      %p295 = scmp.ne.s32.totalorder %s280, %s294
      %p296 = scmp.eq.s32.totalorder %s36, 0
      %p297 = por %p295, %p296
      %s298 = ssub.s32 %s37, %s49
      %s299 = ssub.s32 %s38, %s45
      %s300 = sor.u32 %s298, %s299
      %p301 = scmp.eq.s32.totalorder %s300, 0
      %s303 = sadd.s32 %s302, 1
      %s304 = scalar_select %p301, %s302, %s303
      %p307 = pneg %p301
      %p308 = scmp.eq.s32.totalorder %s30, 3
      %p309 = por %p307, %p308
      %p310 = scmp.ne.s32.totalorder %s302, %s305
      %p311 = scmp.eq.s32.totalorder %s30, 0
      %p312 = por %p310, %p311
      %p313 = scmp.ne.s32.totalorder %s302, %s305
      %p314 = scmp.eq.s32.totalorder %s35, 3
      %p315 = por %p313, %p314
      %p316 = scmp.ne.s32.totalorder %s305, %s306
      %p317 = scmp.eq.s32.totalorder %s35, 0
      %p318 = por %p316, %p317
      %p319 = scmp.ne.s32.totalorder %s305, %s306
      %p320 = scmp.eq.s32.totalorder %s36, 3
      %p321 = por %p319, %p320
      %p323 = scmp.ne.s32.totalorder %s306, %s322
      %p324 = scmp.eq.s32.totalorder %s36, 0
      %p325 = por %p323, %p324
      %s326 = ssub.s32 %s37, %s49
      %s327 = ssub.s32 %s38, %s45
      %s328 = sor.u32 %s326, %s327
      %p329 = scmp.eq.s32.totalorder %s328, 0
      %s331 = sadd.s32 %s330, 1
      %s332 = scalar_select %p329, %s330, %s331
      %p335 = pneg %p329
      %p336 = scmp.eq.s32.totalorder %s30, 3
      %p337 = por %p335, %p336
      %p338 = scmp.ne.s32.totalorder %s330, %s333
      %p339 = scmp.eq.s32.totalorder %s30, 0
      %p340 = por %p338, %p339
      %p341 = scmp.ne.s32.totalorder %s330, %s333
      %p342 = scmp.eq.s32.totalorder %s35, 3
      %p343 = por %p341, %p342
      %p344 = scmp.ne.s32.totalorder %s333, %s334
      %p345 = scmp.eq.s32.totalorder %s35, 0
      %p346 = por %p344, %p345
      %p347 = scmp.ne.s32.totalorder %s333, %s334
      %p348 = scmp.eq.s32.totalorder %s36, 3
      %p349 = por %p347, %p348
      %p351 = scmp.ne.s32.totalorder %s334, %s350
      %p352 = scmp.eq.s32.totalorder %s36, 0
      %p353 = por %p351, %p352
      %s354 = ssub.s32 %s37, %s49
      %p355 = scmp.eq.s32.totalorder %s354, 0
      %s357 = sadd.s32 %s356, 1
      %s358 = scalar_select %p355, %s356, %s357
      %p361 = pneg %p355
      %p362 = scmp.eq.s32.totalorder %s30, 3
      %p363 = por %p361, %p362
      %p364 = scmp.ne.s32.totalorder %s356, %s359
      %p365 = scmp.eq.s32.totalorder %s30, 0
      %p366 = por %p364, %p365
      %p367 = scmp.ne.s32.totalorder %s356, %s359
      %p368 = scmp.eq.s32.totalorder %s35, 3
      %p369 = por %p367, %p368
      %p370 = scmp.ne.s32.totalorder %s359, %s360
      %p371 = scmp.eq.s32.totalorder %s35, 0
      %p372 = por %p370, %p371
      %p373 = scmp.ne.s32.totalorder %s359, %s360
      %p374 = scmp.eq.s32.totalorder %s36, 3
      %p375 = por %p373, %p374
      %p377 = scmp.ne.s32.totalorder %s360, %s376
      %p378 = scmp.eq.s32.totalorder %s36, 0
      %p379 = por %p377, %p378
      %s380 = ssub.s32 %s37, %s49
      %p381 = scmp.eq.s32.totalorder %s380, 0
      %s383 = sadd.s32 %s382, 1
      %s384 = scalar_select %p381, %s382, %s383
      %p387 = pneg %p381
      %p388 = scmp.eq.s32.totalorder %s30, 3
      %p389 = por %p387, %p388
      %p390 = scmp.ne.s32.totalorder %s382, %s385
      %p391 = scmp.eq.s32.totalorder %s30, 0
      %p392 = por %p390, %p391
      %p393 = scmp.ne.s32.totalorder %s382, %s385
      %p394 = scmp.eq.s32.totalorder %s35, 3
      %p395 = por %p393, %p394
      %p396 = scmp.ne.s32.totalorder %s385, %s386
      %p397 = scmp.eq.s32.totalorder %s35, 0
      %p398 = por %p396, %p397
      %p399 = scmp.ne.s32.totalorder %s385, %s386
      %p400 = scmp.eq.s32.totalorder %s36, 3
      %p401 = por %p399, %p400
      %p403 = scmp.ne.s32.totalorder %s386, %s402
      %p404 = scmp.eq.s32.totalorder %s36, 0
      %p405 = por %p403, %p404
      %p406 = scmp.le.s32.totalorder 1, %s30
      %p407 = scmp.lt.s32.totalorder %s30, 5
      %p408 = pnand %p406, %p407
      %p409 = pneg %p408
      // Predicated region
      $region9: #{tpu_custom_call.1} parent=5 // pred_check
        _
      $region10: #{tpu_custom_call.1} parent=5 // pred_check_branch
        %411 = sbr.rel (%p408) target = $region12
      $region11: #{tpu_custom_call.1} parent=5 // pred_region
        %s412 = ssub.s32 %s30, 1
        // Predicated region
        $region13: #{tpu_custom_call.1} parent=11 // pred_check
          %p413 = pneg %p143
        $region14: #{tpu_custom_call.1} parent=11 // pred_check_branch
          %415 = sbr.rel (%p413) target = $region16
        $region15: #{tpu_custom_call.1} parent=11 // pred_region
          _
        $region16: #{tpu_custom_call.1} parent=11 // pred_fallthru
          _
        // Predicated region
        $region17: #{tpu_custom_call.1} parent=11 // pred_check
          %p416 = pneg %p164
        $region18: #{tpu_custom_call.1} parent=11 // pred_check_branch
          %418 = sbr.rel (%p416) target = $region20
        $region19: #{tpu_custom_call.1} parent=11 // pred_region
          _
        $region20: #{tpu_custom_call.1} parent=11 // pred_fallthru
          _
        // Predicated region
        $region21: #{tpu_custom_call.1} parent=11 // pred_check
          %p419 = pneg %p185
        $region22: #{tpu_custom_call.1} parent=11 // pred_check_branch
          %421 = sbr.rel (%p419) target = $region24
        $region23: #{tpu_custom_call.1} parent=11 // pred_region
          _
        $region24: #{tpu_custom_call.1} parent=11 // pred_fallthru
          _
        // Predicated region
        $region25: #{tpu_custom_call.1} parent=11 // pred_check
          %p422 = pneg %p206
        $region26: #{tpu_custom_call.1} parent=11 // pred_check_branch
          %424 = sbr.rel (%p422) target = $region28
        $region27: #{tpu_custom_call.1} parent=11 // pred_region
          _
        $region28: #{tpu_custom_call.1} parent=11 // pred_fallthru
          _
        // Predicated region
        $region29: #{tpu_custom_call.1} parent=11 // pred_check
          %p425 = pneg %p227
        $region30: #{tpu_custom_call.1} parent=11 // pred_check_branch
          %427 = sbr.rel (%p425) target = $region32
        $region31: #{tpu_custom_call.1} parent=11 // pred_region
          _
        $region32: #{tpu_custom_call.1} parent=11 // pred_fallthru
          _
        // Predicated region
        $region33: #{tpu_custom_call.1} parent=11 // pred_check
          %p428 = pneg %p248
        $region34: #{tpu_custom_call.1} parent=11 // pred_check_branch
          %430 = sbr.rel (%p428) target = $region36
        $region35: #{tpu_custom_call.1} parent=11 // pred_region
          _
        $region36: #{tpu_custom_call.1} parent=11 // pred_fallthru
          _
        // Predicated region
        $region37: #{tpu_custom_call.1} parent=11 // pred_check
          %p431 = pneg %p269
        $region38: #{tpu_custom_call.1} parent=11 // pred_check_branch
          %433 = sbr.rel (%p431) target = $region40
        $region39: #{tpu_custom_call.1} parent=11 // pred_region
          _
        $region40: #{tpu_custom_call.1} parent=11 // pred_fallthru
          _
        // Predicated region
        $region41: #{tpu_custom_call.1} parent=11 // pred_check
          %p434 = pneg %p290
        $region42: #{tpu_custom_call.1} parent=11 // pred_check_branch
          %436 = sbr.rel (%p434) target = $region44
        $region43: #{tpu_custom_call.1} parent=11 // pred_region
          _
        $region44: #{tpu_custom_call.1} parent=11 // pred_fallthru
          _
      $region12: #{tpu_custom_call.1} parent=5 // pred_fallthru
        _
      %p437 = scmp.lt.s32.totalorder %s30, 4
      // Predicated region
      $region45: #{tpu_custom_call.1} parent=5 // pred_check
        %p438 = pneg %p437
      $region46: #{tpu_custom_call.1} parent=5 // pred_check_branch
        %440 = sbr.rel (%p438) target = $region48
      $region47: #{tpu_custom_call.1} parent=5 // pred_region
        // Predicated region
        $region49: #{tpu_custom_call.1} parent=47 // pred_check
          %p441 = pneg %p64
        $region50: #{tpu_custom_call.1} parent=47 // pred_check_branch
          %443 = sbr.rel (%p441) target = $region52
        $region51: #{tpu_custom_call.1} parent=47 // pred_region
          %s444 = smul.u32 2, %s38
          %p445 = scmp.lt.s32.totalorder %s37, 1
          %s446 = scalar_select %p445, %s37, 1
          %p447 = scmp.lt.s32.totalorder %s444, 3
          %s448 = scalar_select %p447, %s444, 3
          %s449 = smul.addr %s446, 4
          %s450 = sadd.s32 %s448, %s449
          %s451 = smul.addr %s450, 4
          %s452 = scalar_lea.vmem %s0, %s451
          %s453 = smul.u32 2, %s38
        $region52: #{tpu_custom_call.1} parent=47 // pred_fallthru
          _
        // Predicated region
        $region53: #{tpu_custom_call.1} parent=47 // pred_check
          %p454 = pneg %p90
        $region54: #{tpu_custom_call.1} parent=47 // pred_check_branch
          %456 = sbr.rel (%p454) target = $region56
        $region55: #{tpu_custom_call.1} parent=47 // pred_region
          %p457 = scmp.lt.s32.totalorder %s37, 1
          %s458 = scalar_select %p457, %s37, 1
          %s459 = smul.addr %s458, 8
          %s460 = smul.addr %s459, 4
          %s461 = scalar_lea.vmem %s1, %s460
        $region56: #{tpu_custom_call.1} parent=47 // pred_fallthru
          _
        // Predicated region
        $region57: #{tpu_custom_call.1} parent=47 // pred_check
          %p462 = pneg %p116
        $region58: #{tpu_custom_call.1} parent=47 // pred_check_branch
          %464 = sbr.rel (%p462) target = $region60
        $region59: #{tpu_custom_call.1} parent=47 // pred_region
          %p465 = scmp.lt.s32.totalorder %s37, 1
          %s466 = scalar_select %p465, %s37, 1
          %s467 = smul.addr %s466, 8
          %s468 = smul.addr %s467, 4
          %s469 = scalar_lea.vmem %s2, %s468
        $region60: #{tpu_custom_call.1} parent=47 // pred_fallthru
          _
      $region48: #{tpu_custom_call.1} parent=5 // pred_fallthru
        _
      %p470 = scmp.le.s32.totalorder 1, %s30
      %p471 = scmp.lt.s32.totalorder %s30, 5
      %p472 = pnand %p470, %p471
      %p473 = pneg %p472
      // Predicated region
      $region61: #{tpu_custom_call.1} parent=5 // pred_check
        _
      $region62: #{tpu_custom_call.1} parent=5 // pred_check_branch
        %475 = sbr.rel (%p472) target = $region64
      $region63: #{tpu_custom_call.1} parent=5 // pred_region
        %s476 = ssub.s32 %s30, 1
        %s477 = smul.u32 2, %s40
        %p478 = scmp.lt.s32.totalorder %s39, 1
        %s479 = scalar_select %p478, %s39, 1
        %p480 = scmp.lt.s32.totalorder %s477, 3
        %s481 = scalar_select %p480, %s477, 3
        %s482 = smul.addr %s479, 4
        %s483 = sadd.s32 %s481, %s482
        %s484 = smul.addr %s483, 4
        %s485 = scalar_lea.vmem %s0, %s484
        %p486 = pneg %p70
        %p487 = pneg %p67
        %p488 = scmp.lt.s32.totalorder %s39, 1
        %s489 = scalar_select %p488, %s39, 1
        %s490 = smul.addr %s489, 8
        %s491 = smul.addr %s490, 4
        %s492 = scalar_lea.vmem %s1, %s491
        %p493 = pneg %p96
        %p494 = pneg %p93
        %p495 = scmp.lt.s32.totalorder %s39, 1
        %s496 = scalar_select %p495, %s39, 1
        %s497 = smul.addr %s496, 8
        %s498 = smul.addr %s497, 4
        %s499 = scalar_lea.vmem %s2, %s498
        %p500 = pneg %p122
        %p501 = pneg %p119
        %p502 = pneg %p143
        %p503 = pneg %p140
        %p504 = pneg %p164
        %p505 = pneg %p161
        %p506 = pneg %p185
        %p507 = pneg %p182
        %p508 = pneg %p206
        %p509 = pneg %p203
        %p510 = pneg %p227
        %p511 = pneg %p224
        %p512 = pneg %p248
        %p513 = pneg %p245
        %p514 = pneg %p269
        %p515 = pneg %p266
        %p516 = pneg %p290
        %p517 = pneg %p287
        %p518 = pneg %p318
        %p519 = pneg %p315
        %s520 = sand.u32 %s305, 1
        %s521 = scalar_lea.sflag [#allocation4], %s520
        %s522 = sand.u32 %s305, 1
        %s523 = smul.addr %s522, 64
        %s524 = scalar_lea.vmem [#allocation3], %s523
        %p525 = pneg %p346
        %p526 = pneg %p343
        %s527 = sand.u32 %s35, 1
        %s528 = scalar_lea.sflag [#allocation6], %s527
        %s529 = sand.u32 %s333, 1
        %s530 = smul.addr %s529, 64
        %s531 = scalar_lea.vmem [#allocation5], %s530
        %p532 = pneg %p372
        %p533 = pneg %p369
        %s534 = sand.u32 %s35, 1
        %s535 = scalar_lea.sflag [#allocation6], %s534
        %s536 = sand.u32 %s359, 1
        %s537 = scalar_lea.vmem [#allocation7], %s536
        %p538 = pneg %p398
        %p539 = pneg %p395
        %s540 = sand.u32 %s385, 1
        %s541 = scalar_lea.sflag [#allocation9], %s540
        %s542 = sand.u32 %s385, 1
        %s543 = scalar_lea.vmem [#allocation8], %s542
        %s544 = smul.u32 2, %s40
        %p545 = scmp.lt.s32.totalorder %s39, 1
        %s546 = scalar_select %p545, %s39, 1
        %p547 = scmp.lt.s32.totalorder %s544, 3
        %s548 = scalar_select %p547, %s544, 3
        %s549 = smul.addr %s546, 4
        %s550 = sadd.s32 %s548, %s549
        %s551 = smul.addr %s550, 4
        %s552 = scalar_lea.vmem %s0, %s551
        %s553 = smul.u32 2, %s40
        %p554 = scmp.lt.s32.totalorder %s39, 1
        %s555 = scalar_select %p554, %s39, 1
        %s556 = smul.addr %s555, 8
        %s557 = smul.addr %s556, 4
        %s558 = scalar_lea.vmem %s1, %s557
        %p559 = scmp.lt.s32.totalorder %s39, 1
        %s560 = scalar_select %p559, %s39, 1
        %s561 = smul.addr %s560, 8
        %s562 = smul.addr %s561, 4
        %s563 = scalar_lea.vmem %s2, %s562
        %s564 = smul.u32 2, %s40
        %s565 = smul.u32 2, %s40
        %p567 = scmp.eq.s32.totalorder %s40, 0
        // Predicated region
        $region65: #{tpu_custom_call.1} parent=63 // pred_check
          %p568 = pneg %p567
        $region66: #{tpu_custom_call.1} parent=63 // pred_check_branch
          %570 = sbr.rel (%p568) target = $region68
        $region67: #{tpu_custom_call.1} parent=63 // pred_region
          %v571 = vld [vmem:[%s4] sm:$0xf]
          %v572 = vld [vmem:[%s4 + $0x4] sm:$0xf]
          %v573 = vld [vmem:[%s4 + $0x8] sm:$0xf]
          %v574 = vld [vmem:[%s4 + $0xc] sm:$0xf]
          %v575 = vld [vmem:[%s4 + $0x10] sm:$0xf]
          %v576 = vld [vmem:[%s4 + $0x14] sm:$0xf]
          %v577 = vld [vmem:[%s4 + $0x18] sm:$0xf]
          %v578 = vld [vmem:[%s4 + $0x1c] sm:$0xf]
          %v579 = vld [vmem:[%s558] sm:$0xf]
          %v580 = vld [vmem:[%s558 + $0x4] sm:$0xf]
          %v581 = vld [vmem:[%s558 + $0x8] sm:$0xf]
          %v582 = vld [vmem:[%s558 + $0xc] sm:$0xf]
          %v583 = vld [vmem:[%s558 + $0x10] sm:$0xf]
          %v584 = vld [vmem:[%s558 + $0x14] sm:$0xf]
          %v585 = vld [vmem:[%s558 + $0x18] sm:$0xf]
          %v586 = vld [vmem:[%s558 + $0x1c] sm:$0xf]
          %v587 = vld [vmem:[%s7] sm:$0xff]
          %v588 = vld [vmem:[%s7 + $0x8] sm:$0xff]
          %v589 = vld [vmem:[%s7 + $0x10] sm:$0xff]
          %v590 = vld [vmem:[%s7 + $0x18] sm:$0xff]
          %v591 = vld [vmem:[%s7 + $0x20] sm:$0xff]
          %v592 = vld [vmem:[%s7 + $0x28] sm:$0xff]
          %v593 = vld [vmem:[%s7 + $0x30] sm:$0xff]
          %v594 = vld [vmem:[%s7 + $0x38] sm:$0xff]
          %596 = vset.pattern.permute.xlu0 0
          %597 = vperm.xlu0 %596, %v587
          %v598 = vpop.permute.xlu0 %597
          %601 = vset.pattern.permute.xlu0 0
          %602 = vperm.xlu0 %601, %v588
          %v603 = vpop.permute.xlu0 %602
          %606 = vset.pattern.permute.xlu0 0
          %607 = vperm.xlu0 %606, %v589
          %v608 = vpop.permute.xlu0 %607
          %611 = vset.pattern.permute.xlu0 0
          %612 = vperm.xlu0 %611, %v590
          %v613 = vpop.permute.xlu0 %612
          %616 = vset.pattern.permute.xlu0 0
          %617 = vperm.xlu0 %616, %v591
          %v618 = vpop.permute.xlu0 %617
          %621 = vset.pattern.permute.xlu0 0
          %622 = vperm.xlu0 %621, %v592
          %v623 = vpop.permute.xlu0 %622
          %626 = vset.pattern.permute.xlu0 0
          %627 = vperm.xlu0 %626, %v593
          %v628 = vpop.permute.xlu0 %627
          %631 = vset.pattern.permute.xlu0 0
          %632 = vperm.xlu0 %631, %v594
          %v633 = vpop.permute.xlu0 %632
          %v643 = vunpack.c.l.b16 %v571
          %v644 = vunpack.c.l.b16 %v572
          %v645 = vunpack.c.l.b16 %v573
          %v646 = vunpack.c.l.b16 %v574
          %v647 = vunpack.c.l.b16 %v575
          %v648 = vunpack.c.l.b16 %v576
          %v649 = vunpack.c.l.b16 %v577
          %v650 = vunpack.c.l.b16 %v578
          %v651 = vpack.c.b16 %v644, %v643
          %v652 = vpack.c.b16 %v646, %v645
          %v653 = vpack.c.b16 %v648, %v647
          %v654 = vpack.c.b16 %v650, %v649
          %v663 = vunpack.c.l.b16 %v579
          %v664 = vunpack.c.l.b16 %v580
          %v665 = vunpack.c.l.b16 %v581
          %v666 = vunpack.c.l.b16 %v582
          %v667 = vunpack.c.l.b16 %v583
          %v668 = vunpack.c.l.b16 %v584
          %v669 = vunpack.c.l.b16 %v585
          %v670 = vunpack.c.l.b16 %v586
          %v671 = vpack.c.b16 %v664, %v663
          %v672 = vpack.c.b16 %v666, %v665
          %v673 = vpack.c.b16 %v668, %v667
          %v674 = vpack.c.b16 %v670, %v669
          %vm679 = vcmask 523264
          %v681 = vsel %vm679, %v651, 0
          %v684 = vsel %vm679, %v652, 0
          %v687 = vsel %vm679, %v653, 0
          %v690 = vsel %vm679, %v654, 0
          %692 = vmatprep.subr.bf16.mxu0 0
          %693 = vmatpush1.bf16.msra.mxu0 %v671
          %694 = vmatprep.subr.bf16.mxu0 0
          %695 = vmatpush1.bf16.msra.mxu0 %v672
          %696 = vmatprep.subr.bf16.mxu0 0
          %697 = vmatpush1.bf16.msra.mxu0 %v673
          %698 = vmatprep.subr.bf16.mxu0 0
          %699 = vmatpush1.bf16.msra.mxu0 %v674
          %700 = vmatprep.subr.bf16.mxu0 0
          %701 = vmatpush1.bf16.msra.mxu0 0
          %702 = vmatprep.subr.bf16.mxu0 0
          %703 = vmatpush1.bf16.msra.mxu0 0
          %704 = vmatprep.subr.bf16.mxu0 0
          %705 = vmatpush1.bf16.msra.mxu0 0
          %706 = vmatprep.subr.bf16.mxu0 0
          %707 = vmatpush1.bf16.msra.mxu0 0
          %708 = vmatprep.subr.bf16.mxu0 0
          %709 = vmatpush1.bf16.msra.mxu0 0
          %710 = vmatprep.subr.bf16.mxu0 0
          %711 = vmatpush1.bf16.msra.mxu0 0
          %712 = vmatprep.subr.bf16.mxu0 0
          %713 = vmatpush1.bf16.msra.mxu0 0
          %714 = vmatprep.subr.bf16.mxu0 0
          %715 = vmatpush1.bf16.msra.mxu0 0
          %716 = vmatprep.subr.bf16.mxu0 0
          %717 = vmatpush1.bf16.msra.mxu0 0
          %718 = vmatprep.subr.bf16.mxu0 0
          %719 = vmatpush1.bf16.msra.mxu0 0
          %720 = vmatprep.subr.bf16.mxu0 0
          %721 = vmatpush1.bf16.msra.mxu0 0
          %722 = vmatprep.subr.bf16.mxu0 0
          %723 = vmatpush1.bf16.msra.mxu0 0
          %724 = vmatprep.mubr.bf16.mxu0 0
          %725 = vmatmul.mubr.bf16.gmra.mrb[0].mxu0 %v681
          %v726 = vpop.f32.mrb[0].mxu0
          %v727 = vadd.f32 %v598, %v726
          %v728 = vpop.f32.mrb[0].mxu0
          %v729 = vpop.f32.mrb[0].mxu0
          %v730 = vadd.f32 %v603, %v729
          %v731 = vpop.f32.mrb[0].mxu0
          %732 = vmatprep.mubr.bf16.mxu0 0
          %733 = vmatmul.mubr.bf16.gmra.mrb[0].mxu0 %v684
          %v734 = vpop.f32.mrb[0].mxu0
          %v735 = vadd.f32 %v608, %v734
          %v736 = vpop.f32.mrb[0].mxu0
          %v737 = vpop.f32.mrb[0].mxu0
          %v738 = vadd.f32 %v613, %v737
          %v739 = vpop.f32.mrb[0].mxu0
          %740 = vmatprep.mubr.bf16.mxu0 0
          %741 = vmatmul.mubr.bf16.gmra.mrb[0].mxu0 %v687
          %v742 = vpop.f32.mrb[0].mxu0
          %v743 = vadd.f32 %v618, %v742
          %v744 = vpop.f32.mrb[0].mxu0
          %v745 = vpop.f32.mrb[0].mxu0
          %v746 = vadd.f32 %v623, %v745
          %v747 = vpop.f32.mrb[0].mxu0
          %748 = vmatprep.mubr.bf16.mxu0 0
          %749 = vmatmul.mubr.bf16.gmra.mrb[0].mxu0 %v690
          %v750 = vpop.f32.mrb[0].mxu0
          %v751 = vadd.f32 %v628, %v750
          %v752 = vpop.f32.mrb[0].mxu0
          %v753 = vpop.f32.mrb[0].mxu0
          %v754 = vadd.f32 %v633, %v753
          %v755 = vpop.f32.mrb[0].mxu0
          %756 = vdwg.mxu0
          %v757 = vpack.c.bf16 %v730, %v727
          %v758 = vpack.c.bf16 %v738, %v735
          %v759 = vpack.c.bf16 %v746, %v743
          %v760 = vpack.c.bf16 %v754, %v751
          %vm761 = vcmask 261120
          %762 = vst.msk [vmem:[#allocation2] sm:$0xff] %vm761, %v757
          %763 = vst.msk [vmem:[#allocation2 + $0x8] sm:$0xff] %vm761, %v758
          %764 = vst.msk [vmem:[#allocation2 + $0x10] sm:$0xff] %vm761, %v759
          %765 = vst.msk [vmem:[#allocation2 + $0x18] sm:$0xff] %vm761, %v760
          %v766 = vld [vmem:[%s9] sm:$0x1]
          %v768 = vsel %vm679, %v766, 0
          %770 = vmatprep.subr.mxu0 0.0
          %771 = vmatpush1.msra.mxu0 %v727
          %772 = vmatprep.subr.mxu0 0.0
          %773 = vmatpush1.msra.mxu0 %v730
          %774 = vmatprep.subr.mxu0 0.0
          %775 = vmatpush1.msra.mxu0 %v735
          %776 = vmatprep.subr.mxu0 0.0
          %777 = vmatpush1.msra.mxu0 %v738
          %778 = vmatprep.subr.mxu0 0.0
          %779 = vmatpush1.msra.mxu0 %v743
          %780 = vmatprep.subr.mxu0 0.0
          %781 = vmatpush1.msra.mxu0 %v746
          %782 = vmatprep.subr.mxu0 0.0
          %783 = vmatpush1.msra.mxu0 %v751
          %784 = vmatprep.subr.mxu0 0.0
          %785 = vmatpush1.msra.mxu0 %v754
          %786 = vmatprep.subr.mxu0 0.0
          %787 = vmatpush1.msra.mxu0 0.0
          %788 = vmatprep.subr.mxu0 0.0
          %789 = vmatpush1.msra.mxu0 0.0
          %790 = vmatprep.subr.mxu0 0.0
          %791 = vmatpush1.msra.mxu0 0.0
          %792 = vmatprep.subr.mxu0 0.0
          %793 = vmatpush1.msra.mxu0 0.0
          %794 = vmatprep.subr.mxu0 0.0
          %795 = vmatpush1.msra.mxu0 0.0
          %796 = vmatprep.subr.mxu0 0.0
          %797 = vmatpush1.msra.mxu0 0.0
          %798 = vmatprep.subr.mxu0 0.0
          %799 = vmatpush1.msra.mxu0 0.0
          %800 = vmatprep.subr.mxu0 0.0
          %801 = vmatpush1.msra.mxu0 0.0
          %802 = vmatprep.subr.mxu0 0.0
          %803 = vmatpush1.msra.mxu0 0.0
          %804 = vmatprep.subr.mxu0 0.0
          %805 = vmatpush1.msra.mxu0 0.0
          %806 = vmatprep.subr.mxu0 0.0
          %807 = vmatpush1.msra.mxu0 0.0
          %808 = vmatprep.subr.mxu0 0.0
          %809 = vmatpush1.msra.mxu0 0.0
          %810 = vmatprep.subr.mxu0 0.0
          %811 = vmatpush1.msra.mxu0 0.0
          %812 = vmatprep.subr.mxu0 0.0
          %813 = vmatpush1.msra.mxu0 0.0
          %814 = vmatprep.subr.mxu0 0.0
          %815 = vmatpush1.msra.mxu0 0.0
          %816 = vmatprep.subr.mxu0 0.0
          %817 = vmatpush1.msra.mxu0 0.0
          %818 = vmatprep.subr.mxu0 0.0
          %819 = vmatpush1.msra.mxu0 0.0
          %820 = vmatprep.subr.mxu0 0.0
          %821 = vmatpush1.msra.mxu0 0.0
          %822 = vmatprep.subr.mxu0 0.0
          %823 = vmatpush1.msra.mxu0 0.0
          %824 = vmatprep.subr.mxu0 0.0
          %825 = vmatpush1.msra.mxu0 0.0
          %826 = vmatprep.subr.mxu0 0.0
          %827 = vmatpush1.msra.mxu0 0.0
          %828 = vmatprep.subr.mxu0 0.0
          %829 = vmatpush1.msra.mxu0 0.0
          %830 = vmatprep.subr.mxu0 0.0
          %831 = vmatpush1.msra.mxu0 0.0
          %832 = vmatprep.subr.mxu0 0.0
          %833 = vmatpush1.msra.mxu0 0.0
          %834 = vmatprep.mubr.f32.mxu0 0.0
          %835 = vmatmul.mubr.f32.gmra.mrb[0].mxu0 %v768
          %v836 = vpop.f32.mrb[0].mxu0
          %v837 = vadd.f32 0.0, %v836
          %v838 = vpop.f32.mrb[0].mxu0
          %839 = vdwg.mxu0
          %vm840 = vcmask 253952
          %841 = vst.msk [vmem:[%s537] sm:$0x1] %vm840, %v837
          %v842 = vld [vmem:[%s5] sm:$0xf]
          %v843 = vld [vmem:[%s5 + $0x4] sm:$0xf]
          %v844 = vld [vmem:[%s5 + $0x8] sm:$0xf]
          %v845 = vld [vmem:[%s5 + $0xc] sm:$0xf]
          %v846 = vld [vmem:[%s5 + $0x10] sm:$0xf]
          %v847 = vld [vmem:[%s5 + $0x14] sm:$0xf]
          %v848 = vld [vmem:[%s5 + $0x18] sm:$0xf]
          %v849 = vld [vmem:[%s5 + $0x1c] sm:$0xf]
          %v850 = vld [vmem:[%s563] sm:$0xf]
          %v851 = vld [vmem:[%s563 + $0x4] sm:$0xf]
          %v852 = vld [vmem:[%s563 + $0x8] sm:$0xf]
          %v853 = vld [vmem:[%s563 + $0xc] sm:$0xf]
          %v854 = vld [vmem:[%s563 + $0x10] sm:$0xf]
          %v855 = vld [vmem:[%s563 + $0x14] sm:$0xf]
          %v856 = vld [vmem:[%s563 + $0x18] sm:$0xf]
          %v857 = vld [vmem:[%s563 + $0x1c] sm:$0xf]
          %v858 = vld [vmem:[%s8] sm:$0xff]
          %v859 = vld [vmem:[%s8 + $0x8] sm:$0xff]
          %v860 = vld [vmem:[%s8 + $0x10] sm:$0xff]
          %v861 = vld [vmem:[%s8 + $0x18] sm:$0xff]
          %v862 = vld [vmem:[%s8 + $0x20] sm:$0xff]
          %v863 = vld [vmem:[%s8 + $0x28] sm:$0xff]
          %v864 = vld [vmem:[%s8 + $0x30] sm:$0xff]
          %v865 = vld [vmem:[%s8 + $0x38] sm:$0xff]
          %867 = vset.pattern.permute.xlu0 0
          %868 = vperm.xlu0 %867, %v858
          %v869 = vpop.permute.xlu0 %868
          %872 = vset.pattern.permute.xlu0 0
          %873 = vperm.xlu0 %872, %v859
          %v874 = vpop.permute.xlu0 %873
          %877 = vset.pattern.permute.xlu0 0
          %878 = vperm.xlu0 %877, %v860
          %v879 = vpop.permute.xlu0 %878
          %882 = vset.pattern.permute.xlu0 0
          %883 = vperm.xlu0 %882, %v861
          %v884 = vpop.permute.xlu0 %883
          %887 = vset.pattern.permute.xlu0 0
          %888 = vperm.xlu0 %887, %v862
          %v889 = vpop.permute.xlu0 %888
          %892 = vset.pattern.permute.xlu0 0
          %893 = vperm.xlu0 %892, %v863
          %v894 = vpop.permute.xlu0 %893
          %897 = vset.pattern.permute.xlu0 0
          %898 = vperm.xlu0 %897, %v864
          %v899 = vpop.permute.xlu0 %898
          %902 = vset.pattern.permute.xlu0 0
          %903 = vperm.xlu0 %902, %v865
          %v904 = vpop.permute.xlu0 %903
          %v914 = vunpack.c.l.b16 %v842
          %v915 = vunpack.c.l.b16 %v843
          %v916 = vunpack.c.l.b16 %v844
          %v917 = vunpack.c.l.b16 %v845
          %v918 = vunpack.c.l.b16 %v846
          %v919 = vunpack.c.l.b16 %v847
          %v920 = vunpack.c.l.b16 %v848
          %v921 = vunpack.c.l.b16 %v849
          %v922 = vpack.c.b16 %v915, %v914
          %v923 = vpack.c.b16 %v917, %v916
          %v924 = vpack.c.b16 %v919, %v918
          %v925 = vpack.c.b16 %v921, %v920
          %v934 = vunpack.c.l.b16 %v850
          %v935 = vunpack.c.l.b16 %v851
          %v936 = vunpack.c.l.b16 %v852
          %v937 = vunpack.c.l.b16 %v853
          %v938 = vunpack.c.l.b16 %v854
          %v939 = vunpack.c.l.b16 %v855
          %v940 = vunpack.c.l.b16 %v856
          %v941 = vunpack.c.l.b16 %v857
          %v942 = vpack.c.b16 %v935, %v934
          %v943 = vpack.c.b16 %v937, %v936
          %v944 = vpack.c.b16 %v939, %v938
          %v945 = vpack.c.b16 %v941, %v940
          %v951 = vsel %vm679, %v922, 0
          %v954 = vsel %vm679, %v923, 0
          %v957 = vsel %vm679, %v924, 0
          %v960 = vsel %vm679, %v925, 0
          %962 = vmatprep.subr.bf16.mxu0 0
          %963 = vmatpush1.bf16.msra.mxu0 %v942
          %964 = vmatprep.subr.bf16.mxu0 0
          %965 = vmatpush1.bf16.msra.mxu0 %v943
          %966 = vmatprep.subr.bf16.mxu0 0
          %967 = vmatpush1.bf16.msra.mxu0 %v944
          %968 = vmatprep.subr.bf16.mxu0 0
          %969 = vmatpush1.bf16.msra.mxu0 %v945
          %970 = vmatprep.subr.bf16.mxu0 0
          %971 = vmatpush1.bf16.msra.mxu0 0
          %972 = vmatprep.subr.bf16.mxu0 0
          %973 = vmatpush1.bf16.msra.mxu0 0
          %974 = vmatprep.subr.bf16.mxu0 0
          %975 = vmatpush1.bf16.msra.mxu0 0
          %976 = vmatprep.subr.bf16.mxu0 0
          %977 = vmatpush1.bf16.msra.mxu0 0
          %978 = vmatprep.subr.bf16.mxu0 0
          %979 = vmatpush1.bf16.msra.mxu0 0
          %980 = vmatprep.subr.bf16.mxu0 0
          %981 = vmatpush1.bf16.msra.mxu0 0
          %982 = vmatprep.subr.bf16.mxu0 0
          %983 = vmatpush1.bf16.msra.mxu0 0
          %984 = vmatprep.subr.bf16.mxu0 0
          %985 = vmatpush1.bf16.msra.mxu0 0
          %986 = vmatprep.subr.bf16.mxu0 0
          %987 = vmatpush1.bf16.msra.mxu0 0
          %988 = vmatprep.subr.bf16.mxu0 0
          %989 = vmatpush1.bf16.msra.mxu0 0
          %990 = vmatprep.subr.bf16.mxu0 0
          %991 = vmatpush1.bf16.msra.mxu0 0
          %992 = vmatprep.subr.bf16.mxu0 0
          %993 = vmatpush1.bf16.msra.mxu0 0
          %994 = vmatprep.mubr.bf16.mxu0 0
          %995 = vmatmul.mubr.bf16.gmra.mrb[0].mxu0 %v951
          %v996 = vpop.f32.mrb[0].mxu0
          %v997 = vadd.f32 %v869, %v996
          %v998 = vpop.f32.mrb[0].mxu0
          %v999 = vpop.f32.mrb[0].mxu0
          %v1000 = vadd.f32 %v874, %v999
          %v1001 = vpop.f32.mrb[0].mxu0
          %1002 = vmatprep.mubr.bf16.mxu0 0
          %1003 = vmatmul.mubr.bf16.gmra.mrb[0].mxu0 %v954
          %v1004 = vpop.f32.mrb[0].mxu0
          %v1005 = vadd.f32 %v879, %v1004
          %v1006 = vpop.f32.mrb[0].mxu0
          %v1007 = vpop.f32.mrb[0].mxu0
          %v1008 = vadd.f32 %v884, %v1007
          %v1009 = vpop.f32.mrb[0].mxu0
          %1010 = vmatprep.mubr.bf16.mxu0 0
          %1011 = vmatmul.mubr.bf16.gmra.mrb[0].mxu0 %v957
          %v1012 = vpop.f32.mrb[0].mxu0
          %v1013 = vadd.f32 %v889, %v1012
          %v1014 = vpop.f32.mrb[0].mxu0
          %v1015 = vpop.f32.mrb[0].mxu0
          %v1016 = vadd.f32 %v894, %v1015
          %v1017 = vpop.f32.mrb[0].mxu0
          %1018 = vmatprep.mubr.bf16.mxu0 0
          %1019 = vmatmul.mubr.bf16.gmra.mrb[0].mxu0 %v960
          %v1020 = vpop.f32.mrb[0].mxu0
          %v1021 = vadd.f32 %v899, %v1020
          %v1022 = vpop.f32.mrb[0].mxu0
          %v1023 = vpop.f32.mrb[0].mxu0
          %v1024 = vadd.f32 %v904, %v1023
          %v1025 = vpop.f32.mrb[0].mxu0
          %1026 = vdwg.mxu0
          %v1027 = vpack.c.bf16 %v1000, %v997
          %v1028 = vpack.c.bf16 %v1008, %v1005
          %v1029 = vpack.c.bf16 %v1016, %v1013
          %v1030 = vpack.c.bf16 %v1024, %v1021
          %1035 = vrot.lane.b32.xlu0 %v1027, 32
          %v1036 = vpop.permute.xlu0 %1035
          %1037 = vrot.lane.b32.xlu0 %v1028, 32
          %v1038 = vpop.permute.xlu0 %1037
          %1039 = vrot.lane.b32.xlu0 %v1029, 32
          %v1040 = vpop.permute.xlu0 %1039
          %1041 = vrot.lane.b32.xlu0 %v1030, 32
          %v1042 = vpop.permute.xlu0 %1041
          %vm1047 = vcmask 523520
          %1048 = vst.msk [vmem:[#allocation2] sm:$0xff] %vm1047, %v1036
          %1049 = vst.msk [vmem:[#allocation2 + $0x8] sm:$0xff] %vm1047, %v1038
          %1050 = vst.msk [vmem:[#allocation2 + $0x10] sm:$0xff] %vm1047, %v1040
          %1051 = vst.msk [vmem:[#allocation2 + $0x18] sm:$0xff] %vm1047, %v1042
          %v1052 = vld [vmem:[%s10] sm:$0x1]
          %v1054 = vsel %vm679, %v1052, 0
          %1056 = vmatprep.subr.mxu0 0.0
          %1057 = vmatpush1.msra.mxu0 %v997
          %1058 = vmatprep.subr.mxu0 0.0
          %1059 = vmatpush1.msra.mxu0 %v1000
          %1060 = vmatprep.subr.mxu0 0.0
          %1061 = vmatpush1.msra.mxu0 %v1005
          %1062 = vmatprep.subr.mxu0 0.0
          %1063 = vmatpush1.msra.mxu0 %v1008
          %1064 = vmatprep.subr.mxu0 0.0
          %1065 = vmatpush1.msra.mxu0 %v1013
          %1066 = vmatprep.subr.mxu0 0.0
          %1067 = vmatpush1.msra.mxu0 %v1016
          %1068 = vmatprep.subr.mxu0 0.0
          %1069 = vmatpush1.msra.mxu0 %v1021
          %1070 = vmatprep.subr.mxu0 0.0
          %1071 = vmatpush1.msra.mxu0 %v1024
          %1072 = vmatprep.subr.mxu0 0.0
          %1073 = vmatpush1.msra.mxu0 0.0
          %1074 = vmatprep.subr.mxu0 0.0
          %1075 = vmatpush1.msra.mxu0 0.0
          %1076 = vmatprep.subr.mxu0 0.0
          %1077 = vmatpush1.msra.mxu0 0.0
          %1078 = vmatprep.subr.mxu0 0.0
          %1079 = vmatpush1.msra.mxu0 0.0
          %1080 = vmatprep.subr.mxu0 0.0
          %1081 = vmatpush1.msra.mxu0 0.0
          %1082 = vmatprep.subr.mxu0 0.0
          %1083 = vmatpush1.msra.mxu0 0.0
          %1084 = vmatprep.subr.mxu0 0.0
          %1085 = vmatpush1.msra.mxu0 0.0
          %1086 = vmatprep.subr.mxu0 0.0
          %1087 = vmatpush1.msra.mxu0 0.0
          %1088 = vmatprep.subr.mxu0 0.0
          %1089 = vmatpush1.msra.mxu0 0.0
          %1090 = vmatprep.subr.mxu0 0.0
          %1091 = vmatpush1.msra.mxu0 0.0
          %1092 = vmatprep.subr.mxu0 0.0
          %1093 = vmatpush1.msra.mxu0 0.0
          %1094 = vmatprep.subr.mxu0 0.0
          %1095 = vmatpush1.msra.mxu0 0.0
          %1096 = vmatprep.subr.mxu0 0.0
          %1097 = vmatpush1.msra.mxu0 0.0
          %1098 = vmatprep.subr.mxu0 0.0
          %1099 = vmatpush1.msra.mxu0 0.0
          %1100 = vmatprep.subr.mxu0 0.0
          %1101 = vmatpush1.msra.mxu0 0.0
          %1102 = vmatprep.subr.mxu0 0.0
          %1103 = vmatpush1.msra.mxu0 0.0
          %1104 = vmatprep.subr.mxu0 0.0
          %1105 = vmatpush1.msra.mxu0 0.0
          %1106 = vmatprep.subr.mxu0 0.0
          %1107 = vmatpush1.msra.mxu0 0.0
          %1108 = vmatprep.subr.mxu0 0.0
          %1109 = vmatpush1.msra.mxu0 0.0
          %1110 = vmatprep.subr.mxu0 0.0
          %1111 = vmatpush1.msra.mxu0 0.0
          %1112 = vmatprep.subr.mxu0 0.0
          %1113 = vmatpush1.msra.mxu0 0.0
          %1114 = vmatprep.subr.mxu0 0.0
          %1115 = vmatpush1.msra.mxu0 0.0
          %1116 = vmatprep.subr.mxu0 0.0
          %1117 = vmatpush1.msra.mxu0 0.0
          %1118 = vmatprep.subr.mxu0 0.0
          %1119 = vmatpush1.msra.mxu0 0.0
          %1120 = vmatprep.mubr.f32.mxu0 0.0
          %1121 = vmatmul.mubr.f32.gmra.mrb[0].mxu0 %v1054
          %v1122 = vpop.f32.mrb[0].mxu0
          %v1123 = vadd.f32 0.0, %v1122
          %v1124 = vpop.f32.mrb[0].mxu0
          %1125 = vdwg.mxu0
          %1126 = vst.msk [vmem:[%s543] sm:$0x1] %vm840, %v1123
        $region68: #{tpu_custom_call.1} parent=63 // pred_fallthru
          _
        %v1127 = vld [vmem:[%s552] sm:$0xf]
        %v1128 = vld [vmem:[%s552 + $0x4] sm:$0xf]
        %v1129 = vld [vmem:[%s3] sm:$0xf]
        %v1130 = vld [vmem:[%s3 + $0x4] sm:$0xf]
        %v1131 = vld [vmem:[%s3 + $0x8] sm:$0xf]
        %v1132 = vld [vmem:[%s3 + $0xc] sm:$0xf]
        %v1133 = vld [vmem:[%s3 + $0x10] sm:$0xf]
        %v1134 = vld [vmem:[%s3 + $0x14] sm:$0xf]
        %v1135 = vld [vmem:[%s3 + $0x18] sm:$0xf]
        %v1136 = vld [vmem:[%s3 + $0x1c] sm:$0xf]
        %v1137 = vld [vmem:[%s6] sm:$0x1]
        %v1139 = vlaneseq
        %v1140 = vshrl.u32 %v1139, 7
        %v1141 = vsub.s32 0, %v1140
        %v1142 = vrot.slane %v1137, %v1141
        %v1146 = vunpack.c.l.b16 %v1127
        %v1147 = vunpack.c.l.b16 %v1128
        %v1148 = vpack.c.b16 %v1147, %v1146
        %v1157 = vunpack.c.l.b16 %v1129
        %v1158 = vunpack.c.l.b16 %v1130
        %v1159 = vunpack.c.l.b16 %v1131
        %v1160 = vunpack.c.l.b16 %v1132
        %v1161 = vunpack.c.l.b16 %v1133
        %v1162 = vunpack.c.l.b16 %v1134
        %v1163 = vunpack.c.l.b16 %v1135
        %v1164 = vunpack.c.l.b16 %v1136
        %v1165 = vpack.c.b16 %v1158, %v1157
        %v1166 = vpack.c.b16 %v1160, %v1159
        %v1167 = vpack.c.b16 %v1162, %v1161
        %v1168 = vpack.c.b16 %v1164, %v1163
        %vm1173 = vcmask 523264
        %v1175 = vsel %vm1173, %v1148, 0
        %1177 = vmatprep.subr.bf16.mxu0 0
        %1178 = vmatpush1.bf16.msra.mxu0 %v1165
        %1179 = vmatprep.subr.bf16.mxu0 0
        %1180 = vmatpush1.bf16.msra.mxu0 %v1166
        %1181 = vmatprep.subr.bf16.mxu0 0
        %1182 = vmatpush1.bf16.msra.mxu0 %v1167
        %1183 = vmatprep.subr.bf16.mxu0 0
        %1184 = vmatpush1.bf16.msra.mxu0 %v1168
        %1185 = vmatprep.subr.bf16.mxu0 0
        %1186 = vmatpush1.bf16.msra.mxu0 0
        %1187 = vmatprep.subr.bf16.mxu0 0
        %1188 = vmatpush1.bf16.msra.mxu0 0
        %1189 = vmatprep.subr.bf16.mxu0 0
        %1190 = vmatpush1.bf16.msra.mxu0 0
        %1191 = vmatprep.subr.bf16.mxu0 0
        %1192 = vmatpush1.bf16.msra.mxu0 0
        %1193 = vmatprep.subr.bf16.mxu0 0
        %1194 = vmatpush1.bf16.msra.mxu0 0
        %1195 = vmatprep.subr.bf16.mxu0 0
        %1196 = vmatpush1.bf16.msra.mxu0 0
        %1197 = vmatprep.subr.bf16.mxu0 0
        %1198 = vmatpush1.bf16.msra.mxu0 0
        %1199 = vmatprep.subr.bf16.mxu0 0
        %1200 = vmatpush1.bf16.msra.mxu0 0
        %1201 = vmatprep.subr.bf16.mxu0 0
        %1202 = vmatpush1.bf16.msra.mxu0 0
        %1203 = vmatprep.subr.bf16.mxu0 0
        %1204 = vmatpush1.bf16.msra.mxu0 0
        %1205 = vmatprep.subr.bf16.mxu0 0
        %1206 = vmatpush1.bf16.msra.mxu0 0
        %1207 = vmatprep.subr.bf16.mxu0 0
        %1208 = vmatpush1.bf16.msra.mxu0 0
        %1209 = vmatprep.mubr.bf16.mxu0 0
        %1210 = vmatmul.mubr.bf16.gmra.mrb[0].mxu0 %v1175
        %v1211 = vpop.f32.mrb[0].mxu0
        %v1212 = vadd.f32 %v1142, %v1211
        %v1213 = vpop.f32.mrb[0].mxu0
        %v1214 = vpop.f32.mrb[0].mxu0
        %v1215 = vadd.f32 %v1142, %v1214
        %v1216 = vpop.f32.mrb[0].mxu0
        %1217 = vdwg.mxu0
        %v1218 = vpack.c.bf16 %v1215, %v1212
        %v1219 = vld [vmem:[#allocation2] sm:$0xff]
        %vm1220 = vcmask 130048
        %v1222 = vsel %vm1220, %v1218, 0
        %1224 = vmatprep.subr.bf16.mxu0 0
        %1225 = vmatpush1.bf16.msra.mxu0 %v1219
        %1226 = vmatprep.subr.bf16.mxu0 0
        %1227 = vmatpush1.bf16.msra.mxu0 0
        %1228 = vmatprep.subr.bf16.mxu0 0
        %1229 = vmatpush1.bf16.msra.mxu0 0
        %1230 = vmatprep.subr.bf16.mxu0 0
        %1231 = vmatpush1.bf16.msra.mxu0 0
        %1232 = vmatprep.subr.bf16.mxu0 0
        %1233 = vmatpush1.bf16.msra.mxu0 0
        %1234 = vmatprep.subr.bf16.mxu0 0
        %1235 = vmatpush1.bf16.msra.mxu0 0
        %1236 = vmatprep.subr.bf16.mxu0 0
        %1237 = vmatpush1.bf16.msra.mxu0 0
        %1238 = vmatprep.subr.bf16.mxu0 0
        %1239 = vmatpush1.bf16.msra.mxu0 0
        %1240 = vmatprep.subr.bf16.mxu0 0
        %1241 = vmatpush1.bf16.msra.mxu0 0
        %1242 = vmatprep.subr.bf16.mxu0 0
        %1243 = vmatpush1.bf16.msra.mxu0 0
        %1244 = vmatprep.subr.bf16.mxu0 0
        %1245 = vmatpush1.bf16.msra.mxu0 0
        %1246 = vmatprep.subr.bf16.mxu0 0
        %1247 = vmatpush1.bf16.msra.mxu0 0
        %1248 = vmatprep.subr.bf16.mxu0 0
        %1249 = vmatpush1.bf16.msra.mxu0 0
        %1250 = vmatprep.subr.bf16.mxu0 0
        %1251 = vmatpush1.bf16.msra.mxu0 0
        %1252 = vmatprep.subr.bf16.mxu0 0
        %1253 = vmatpush1.bf16.msra.mxu0 0
        %1254 = vmatprep.subr.bf16.mxu0 0
        %1255 = vmatpush1.bf16.msra.mxu0 0
        %1256 = vmatprep.mubr.bf16.mxu0 0
        %1257 = vmatmul.mubr.bf16.gmra.mrb[0].mxu0 %v1222
        %v1258 = vpop.f32.mrb[0].mxu0
        %v1259 = vadd.f32 0.0, %v1258
        %v1260 = vpop.f32.mrb[0].mxu0
        %v1261 = vpop.f32.mrb[0].mxu0
        %v1262 = vadd.f32 0.0, %v1261
        %v1263 = vpop.f32.mrb[0].mxu0
        %1264 = vdwg.mxu0
        %vm1265 = vcmask 261120
        %1266 = vst.msk [vmem:[%s524] sm:$0xff] %vm1265, %v1259
        %1267 = vst.msk [vmem:[%s524 + $0x8] sm:$0xff] %vm1265, %v1262
        %1270 = vrot.lane.b32.xlu0 %v1259, 96
        %v1271 = vpop.permute.xlu0 %1270
        %1272 = vrot.lane.b32.xlu0 %v1262, 96
        %v1273 = vpop.permute.xlu0 %1272
        %1276 = vst.msk [vmem:[%s531] sm:$0xff] %vm1265, %v1271
        %1277 = vst.msk [vmem:[%s531 + $0x8] sm:$0xff] %vm1265, %v1273
        %v1278 = vld [vmem:[#allocation2 + $0x8] sm:$0xff]
        %1280 = vrot.lane.b32.xlu0 %v1218, 112
        %v1281 = vpop.permute.xlu0 %1280
        %v1283 = vsel %vm1220, %v1281, 0
        %1285 = vmatprep.subr.bf16.mxu0 0
        %1286 = vmatpush1.bf16.msra.mxu0 %v1278
        %1287 = vmatprep.subr.bf16.mxu0 0
        %1288 = vmatpush1.bf16.msra.mxu0 0
        %1289 = vmatprep.subr.bf16.mxu0 0
        %1290 = vmatpush1.bf16.msra.mxu0 0
        %1291 = vmatprep.subr.bf16.mxu0 0
        %1292 = vmatpush1.bf16.msra.mxu0 0
        %1293 = vmatprep.subr.bf16.mxu0 0
        %1294 = vmatpush1.bf16.msra.mxu0 0
        %1295 = vmatprep.subr.bf16.mxu0 0
        %1296 = vmatpush1.bf16.msra.mxu0 0
        %1297 = vmatprep.subr.bf16.mxu0 0
        %1298 = vmatpush1.bf16.msra.mxu0 0
        %1299 = vmatprep.subr.bf16.mxu0 0
        %1300 = vmatpush1.bf16.msra.mxu0 0
        %1301 = vmatprep.subr.bf16.mxu0 0
        %1302 = vmatpush1.bf16.msra.mxu0 0
        %1303 = vmatprep.subr.bf16.mxu0 0
        %1304 = vmatpush1.bf16.msra.mxu0 0
        %1305 = vmatprep.subr.bf16.mxu0 0
        %1306 = vmatpush1.bf16.msra.mxu0 0
        %1307 = vmatprep.subr.bf16.mxu0 0
        %1308 = vmatpush1.bf16.msra.mxu0 0
        %1309 = vmatprep.subr.bf16.mxu0 0
        %1310 = vmatpush1.bf16.msra.mxu0 0
        %1311 = vmatprep.subr.bf16.mxu0 0
        %1312 = vmatpush1.bf16.msra.mxu0 0
        %1313 = vmatprep.subr.bf16.mxu0 0
        %1314 = vmatpush1.bf16.msra.mxu0 0
        %1315 = vmatprep.subr.bf16.mxu0 0
        %1316 = vmatpush1.bf16.msra.mxu0 0
        %1317 = vmatprep.mubr.bf16.mxu0 0
        %1318 = vmatmul.mubr.bf16.gmra.mrb[0].mxu0 %v1283
        %v1319 = vpop.f32.mrb[0].mxu0
        %v1320 = vadd.f32 0.0, %v1319
        %v1321 = vpop.f32.mrb[0].mxu0
        %v1322 = vpop.f32.mrb[0].mxu0
        %v1323 = vadd.f32 0.0, %v1322
        %v1324 = vpop.f32.mrb[0].mxu0
        %1325 = vdwg.mxu0
        %s1326 = scalar_lea.vmem %s524, 16 [#allocation3]
        %1327 = vst.msk [vmem:[%s1326] sm:$0xff] %vm1265, %v1320
        %1328 = vst.msk [vmem:[%s1326 + $0x8] sm:$0xff] %vm1265, %v1323
        %1331 = vrot.lane.b32.xlu0 %v1320, 96
        %v1332 = vpop.permute.xlu0 %1331
        %1333 = vrot.lane.b32.xlu0 %v1323, 96
        %v1334 = vpop.permute.xlu0 %1333
        %s1337 = scalar_lea.vmem %s531, 16 [#allocation5]
        %1338 = vst.msk [vmem:[%s1337] sm:$0xff] %vm1265, %v1332
        %1339 = vst.msk [vmem:[%s1337 + $0x8] sm:$0xff] %vm1265, %v1334
        %v1340 = vld [vmem:[#allocation2 + $0x10] sm:$0xff]
        %1341 = vrot.lane.b32.xlu0 %v1218, 96
        %v1342 = vpop.permute.xlu0 %1341
        %v1344 = vsel %vm1220, %v1342, 0
        %1346 = vmatprep.subr.bf16.mxu0 0
        %1347 = vmatpush1.bf16.msra.mxu0 %v1340
        %1348 = vmatprep.subr.bf16.mxu0 0
        %1349 = vmatpush1.bf16.msra.mxu0 0
        %1350 = vmatprep.subr.bf16.mxu0 0
        %1351 = vmatpush1.bf16.msra.mxu0 0
        %1352 = vmatprep.subr.bf16.mxu0 0
        %1353 = vmatpush1.bf16.msra.mxu0 0
        %1354 = vmatprep.subr.bf16.mxu0 0
        %1355 = vmatpush1.bf16.msra.mxu0 0
        %1356 = vmatprep.subr.bf16.mxu0 0
        %1357 = vmatpush1.bf16.msra.mxu0 0
        %1358 = vmatprep.subr.bf16.mxu0 0
        %1359 = vmatpush1.bf16.msra.mxu0 0
        %1360 = vmatprep.subr.bf16.mxu0 0
        %1361 = vmatpush1.bf16.msra.mxu0 0
        %1362 = vmatprep.subr.bf16.mxu0 0
        %1363 = vmatpush1.bf16.msra.mxu0 0
        %1364 = vmatprep.subr.bf16.mxu0 0
        %1365 = vmatpush1.bf16.msra.mxu0 0
        %1366 = vmatprep.subr.bf16.mxu0 0
        %1367 = vmatpush1.bf16.msra.mxu0 0
        %1368 = vmatprep.subr.bf16.mxu0 0
        %1369 = vmatpush1.bf16.msra.mxu0 0
        %1370 = vmatprep.subr.bf16.mxu0 0
        %1371 = vmatpush1.bf16.msra.mxu0 0
        %1372 = vmatprep.subr.bf16.mxu0 0
        %1373 = vmatpush1.bf16.msra.mxu0 0
        %1374 = vmatprep.subr.bf16.mxu0 0
        %1375 = vmatpush1.bf16.msra.mxu0 0
        %1376 = vmatprep.subr.bf16.mxu0 0
        %1377 = vmatpush1.bf16.msra.mxu0 0
        %1378 = vmatprep.mubr.bf16.mxu0 0
        %1379 = vmatmul.mubr.bf16.gmra.mrb[0].mxu0 %v1344
        %v1380 = vpop.f32.mrb[0].mxu0
        %v1381 = vadd.f32 0.0, %v1380
        %v1382 = vpop.f32.mrb[0].mxu0
        %v1383 = vpop.f32.mrb[0].mxu0
        %v1384 = vadd.f32 0.0, %v1383
        %v1385 = vpop.f32.mrb[0].mxu0
        %1386 = vdwg.mxu0
        %s1387 = scalar_lea.vmem %s524, 32 [#allocation3]
        %1388 = vst.msk [vmem:[%s1387] sm:$0xff] %vm1265, %v1381
        %1389 = vst.msk [vmem:[%s1387 + $0x8] sm:$0xff] %vm1265, %v1384
        %1392 = vrot.lane.b32.xlu0 %v1381, 96
        %v1393 = vpop.permute.xlu0 %1392
        %1394 = vrot.lane.b32.xlu0 %v1384, 96
        %v1395 = vpop.permute.xlu0 %1394
        %s1398 = scalar_lea.vmem %s531, 32 [#allocation5]
        %1399 = vst.msk [vmem:[%s1398] sm:$0xff] %vm1265, %v1393
        %1400 = vst.msk [vmem:[%s1398 + $0x8] sm:$0xff] %vm1265, %v1395
        %v1401 = vld [vmem:[#allocation2 + $0x18] sm:$0xff]
        %1402 = vrot.lane.b32.xlu0 %v1218, 80
        %v1403 = vpop.permute.xlu0 %1402
        %v1405 = vsel %vm1220, %v1403, 0
        %1407 = vmatprep.subr.bf16.mxu0 0
        %1408 = vmatpush1.bf16.msra.mxu0 %v1401
        %1409 = vmatprep.subr.bf16.mxu0 0
        %1410 = vmatpush1.bf16.msra.mxu0 0
        %1411 = vmatprep.subr.bf16.mxu0 0
        %1412 = vmatpush1.bf16.msra.mxu0 0
        %1413 = vmatprep.subr.bf16.mxu0 0
        %1414 = vmatpush1.bf16.msra.mxu0 0
        %1415 = vmatprep.subr.bf16.mxu0 0
        %1416 = vmatpush1.bf16.msra.mxu0 0
        %1417 = vmatprep.subr.bf16.mxu0 0
        %1418 = vmatpush1.bf16.msra.mxu0 0
        %1419 = vmatprep.subr.bf16.mxu0 0
        %1420 = vmatpush1.bf16.msra.mxu0 0
        %1421 = vmatprep.subr.bf16.mxu0 0
        %1422 = vmatpush1.bf16.msra.mxu0 0
        %1423 = vmatprep.subr.bf16.mxu0 0
        %1424 = vmatpush1.bf16.msra.mxu0 0
        %1425 = vmatprep.subr.bf16.mxu0 0
        %1426 = vmatpush1.bf16.msra.mxu0 0
        %1427 = vmatprep.subr.bf16.mxu0 0
        %1428 = vmatpush1.bf16.msra.mxu0 0
        %1429 = vmatprep.subr.bf16.mxu0 0
        %1430 = vmatpush1.bf16.msra.mxu0 0
        %1431 = vmatprep.subr.bf16.mxu0 0
        %1432 = vmatpush1.bf16.msra.mxu0 0
        %1433 = vmatprep.subr.bf16.mxu0 0
        %1434 = vmatpush1.bf16.msra.mxu0 0
        %1435 = vmatprep.subr.bf16.mxu0 0
        %1436 = vmatpush1.bf16.msra.mxu0 0
        %1437 = vmatprep.subr.bf16.mxu0 0
        %1438 = vmatpush1.bf16.msra.mxu0 0
        %1439 = vmatprep.mubr.bf16.mxu0 0
        %1440 = vmatmul.mubr.bf16.gmra.mrb[0].mxu0 %v1405
        %v1441 = vpop.f32.mrb[0].mxu0
        %v1442 = vadd.f32 0.0, %v1441
        %v1443 = vpop.f32.mrb[0].mxu0
        %v1444 = vpop.f32.mrb[0].mxu0
        %v1445 = vadd.f32 0.0, %v1444
        %v1446 = vpop.f32.mrb[0].mxu0
        %1447 = vdwg.mxu0
        %s1448 = scalar_lea.vmem %s524, 48 [#allocation3]
        %1449 = vst.msk [vmem:[%s1448] sm:$0xff] %vm1265, %v1442
        %1450 = vst.msk [vmem:[%s1448 + $0x8] sm:$0xff] %vm1265, %v1445
        %1453 = vrot.lane.b32.xlu0 %v1442, 96
        %v1454 = vpop.permute.xlu0 %1453
        %1455 = vrot.lane.b32.xlu0 %v1445, 96
        %v1456 = vpop.permute.xlu0 %1455
        %s1459 = scalar_lea.vmem %s531, 48 [#allocation5]
        %1460 = vst.msk [vmem:[%s1459] sm:$0xff] %vm1265, %v1454
        %1461 = vst.msk [vmem:[%s1459 + $0x8] sm:$0xff] %vm1265, %v1456
        %s1462 = sand.u32 %s305, 1
        %s1463 = scalar_lea.sflag [#allocation4], %s1462
        %s1464 = sand.u32 %s305, 1
        %s1465 = smul.addr %s1464, 64
        %s1466 = scalar_lea.vmem [#allocation3], %s1465
        %s1467 = sand.u32 %s35, 1
        %s1468 = scalar_lea.sflag [#allocation6], %s1467
        %s1469 = sand.u32 %s333, 1
        %s1470 = smul.addr %s1469, 64
        %s1471 = scalar_lea.vmem [#allocation5], %s1470
        %s1472 = sand.u32 %s35, 1
        %s1473 = scalar_lea.sflag [#allocation6], %s1472
        %s1474 = sand.u32 %s359, 1
        %s1475 = scalar_lea.vmem [#allocation7], %s1474
        %s1476 = sand.u32 %s385, 1
        %s1477 = scalar_lea.sflag [#allocation9], %s1476
        %s1478 = sand.u32 %s385, 1
        %s1479 = scalar_lea.vmem [#allocation8], %s1478
        // Predicated region
        $region69: #{tpu_custom_call.1} parent=63 // pred_check
          %p1480 = pneg %p315
        $region70: #{tpu_custom_call.1} parent=63 // pred_check_branch
          %1482 = sbr.rel (%p1480) target = $region72
        $region71: #{tpu_custom_call.1} parent=63 // pred_region
          #allocation11 [shape = 'u32[6]{0}', space=smem, size = 0x18, scoped, tag = 'DMA stride descriptor']
          %s1483 = smul.u32 2, %s40
          %s1485 = ssub.s32 1024, 1024
          %1486 = vsyncadd %s1463, %s1485
          %s1487 = smul.addr %s39, 16
          %s1488 = sadd.s32 %s1483, %s1487
          %s1489 = smul.addr %s1488, 128
          %s1490 = scalar_lea.hbm %s11, %s1489
          %s1492 = sshll.u32 1, 14
          %s1493 = sxor.u32 4294967295, %s1492
          %s1496 = sshll.u32 7, 18
          %s1497 = sxor.u32 4294967295, %s1496
          %s1498 = sand.u32 0, %s1497
          %s1500 = sor.u32 %s1498, 0
          %s1502 = sshll.u32 3, 24
          %s1503 = sxor.u32 4294967295, %s1502
          %s1504 = sand.u32 %s1500, %s1503
          %s1506 = sor.u32 %s1504, 0
          %s1507 = sshll.u32 %s1466, 4
          %s1508 = int_to_ptr.vmem [resolvable:$true] %s1507
          %1514 = sst [smem:[#allocation11]] 256
          %s1515 = scalar_lea.smem [#allocation11], 1
          %1516 = sst [smem:[%s1515]] 512
          %s1517 = scalar_lea.smem [#allocation11], 2
          %1518 = sst [smem:[%s1517]] 2
          %s1519 = scalar_lea.smem [#allocation11], 3
          %1520 = sst [smem:[%s1519]] 128
          %s1521 = scalar_lea.smem [#allocation11], 4
          %1522 = sst [smem:[%s1521]] 128
          %s1523 = scalar_lea.smem [#allocation11], 5
          %1524 = sst [smem:[%s1523]] 8
          %1526 = dma.general %s1508, 1024, %s1490, %s1463, [#allocation10], [#allocation11], %s1506, 0
        $region72: #{tpu_custom_call.1} parent=63 // pred_fallthru
          _
        // Predicated region
        $region73: #{tpu_custom_call.1} parent=63 // pred_check
          %p1527 = pneg %p343
        $region74: #{tpu_custom_call.1} parent=63 // pred_check_branch
          %1529 = sbr.rel (%p1527) target = $region76
        $region75: #{tpu_custom_call.1} parent=63 // pred_region
          #allocation13 [shape = 'u32[6]{0}', space=smem, size = 0x18, scoped, tag = 'DMA stride descriptor']
          %s1530 = smul.u32 2, %s40
          %s1532 = ssub.s32 1024, 1024
          %1533 = vsyncadd %s1468, %s1532
          %s1534 = smul.addr %s39, 16
          %s1535 = sadd.s32 %s1530, %s1534
          %s1536 = smul.addr %s1535, 128
          %s1537 = scalar_lea.hbm %s12, %s1536
          %s1539 = sshll.u32 1, 14
          %s1540 = sxor.u32 4294967295, %s1539
          %s1543 = sshll.u32 7, 18
          %s1544 = sxor.u32 4294967295, %s1543
          %s1545 = sand.u32 0, %s1544
          %s1547 = sor.u32 %s1545, 0
          %s1549 = sshll.u32 3, 24
          %s1550 = sxor.u32 4294967295, %s1549
          %s1551 = sand.u32 %s1547, %s1550
          %s1553 = sor.u32 %s1551, 0
          %s1554 = sshll.u32 %s1471, 4
          %s1555 = int_to_ptr.vmem [resolvable:$true] %s1554
          %1561 = sst [smem:[#allocation13]] 256
          %s1562 = scalar_lea.smem [#allocation13], 1
          %1563 = sst [smem:[%s1562]] 512
          %s1564 = scalar_lea.smem [#allocation13], 2
          %1565 = sst [smem:[%s1564]] 2
          %s1566 = scalar_lea.smem [#allocation13], 3
          %1567 = sst [smem:[%s1566]] 128
          %s1568 = scalar_lea.smem [#allocation13], 4
          %1569 = sst [smem:[%s1568]] 128
          %s1570 = scalar_lea.smem [#allocation13], 5
          %1571 = sst [smem:[%s1570]] 8
          %1573 = dma.general %s1555, 1024, %s1537, %s1468, [#allocation12], [#allocation13], %s1553, 0
        $region76: #{tpu_custom_call.1} parent=63 // pred_fallthru
          _
        // Predicated region
        $region77: #{tpu_custom_call.1} parent=63 // pred_check
          %p1574 = pneg %p369
        $region78: #{tpu_custom_call.1} parent=63 // pred_check_branch
          %1576 = sbr.rel (%p1574) target = $region80
        $region79: #{tpu_custom_call.1} parent=63 // pred_region
          %s1578 = ssub.s32 16, 16
          %1579 = vsyncadd %s1473, %s1578
          %s1580 = smul.addr %s39, 16
          %s1581 = scalar_lea.hbm %s13, %s1580
          %s1583 = sshll.u32 %s1475, 4
          %s1584 = int_to_ptr.vmem [resolvable:$true] %s1583
          %1586 = dma.vmem_to_hbm [thread:$0]  %s1584, 16, %s1581, %s1473
        $region80: #{tpu_custom_call.1} parent=63 // pred_fallthru
          _
        // Predicated region
        $region81: #{tpu_custom_call.1} parent=63 // pred_check
          %p1587 = pneg %p395
        $region82: #{tpu_custom_call.1} parent=63 // pred_check_branch
          %1589 = sbr.rel (%p1587) target = $region84
        $region83: #{tpu_custom_call.1} parent=63 // pred_region
          %s1591 = ssub.s32 16, 16
          %1592 = vsyncadd %s1477, %s1591
          %s1593 = smul.addr %s39, 16
          %s1594 = scalar_lea.hbm %s14, %s1593
          %s1596 = sshll.u32 %s1479, 4
          %s1597 = int_to_ptr.vmem [resolvable:$true] %s1596
          %1599 = dma.vmem_to_hbm [thread:$0]  %s1597, 16, %s1594, %s1477
        $region84: #{tpu_custom_call.1} parent=63 // pred_fallthru
          _
      $region64: #{tpu_custom_call.1} parent=5 // pred_fallthru
        _
      %p1600 = scmp.le.s32.totalorder 2, %s30
      // Predicated region
      $region85: #{tpu_custom_call.1} parent=5 // pred_check
        %p1601 = pneg %p1600
      $region86: #{tpu_custom_call.1} parent=5 // pred_check_branch
        %1603 = sbr.rel (%p1601) target = $region88
      $region87: #{tpu_custom_call.1} parent=5 // pred_region
        %s1604 = ssub.s32 %s30, 2
        // Predicated region
        $region89: #{tpu_custom_call.1} parent=87 // pred_check
          %p1605 = pneg %p321
        $region90: #{tpu_custom_call.1} parent=87 // pred_check_branch
          %1607 = sbr.rel (%p1605) target = $region92
        $region91: #{tpu_custom_call.1} parent=87 // pred_region
          %s1608 = sand.u32 %s306, 1
          %s1609 = scalar_lea.sflag [#allocation4], %s1608
          %s1610 = sand.u32 %s306, 1
          %s1611 = smul.addr %s1610, 64
          %s1612 = scalar_lea.vmem [#allocation3], %s1611
          %1613 = dma.done %s1609, 1024
        $region92: #{tpu_custom_call.1} parent=87 // pred_fallthru
          _
        // Predicated region
        $region93: #{tpu_custom_call.1} parent=87 // pred_check
          %p1614 = pneg %p349
        $region94: #{tpu_custom_call.1} parent=87 // pred_check_branch
          %1616 = sbr.rel (%p1614) target = $region96
        $region95: #{tpu_custom_call.1} parent=87 // pred_region
          %s1617 = sand.u32 %s36, 1
          %s1618 = scalar_lea.sflag [#allocation6], %s1617
          %s1619 = sand.u32 %s334, 1
          %s1620 = smul.addr %s1619, 64
          %s1621 = scalar_lea.vmem [#allocation5], %s1620
          %1622 = dma.done %s1618, 1024
        $region96: #{tpu_custom_call.1} parent=87 // pred_fallthru
          _
        // Predicated region
        $region97: #{tpu_custom_call.1} parent=87 // pred_check
          %p1623 = pneg %p375
        $region98: #{tpu_custom_call.1} parent=87 // pred_check_branch
          %1625 = sbr.rel (%p1623) target = $region100
        $region99: #{tpu_custom_call.1} parent=87 // pred_region
          %s1626 = sand.u32 %s36, 1
          %s1627 = scalar_lea.sflag [#allocation6], %s1626
          %s1628 = sand.u32 %s360, 1
          %s1629 = scalar_lea.vmem [#allocation7], %s1628
          %1630 = dma.done %s1627, 16
        $region100: #{tpu_custom_call.1} parent=87 // pred_fallthru
          _
        // Predicated region
        $region101: #{tpu_custom_call.1} parent=87 // pred_check
          %p1631 = pneg %p401
        $region102: #{tpu_custom_call.1} parent=87 // pred_check_branch
          %1633 = sbr.rel (%p1631) target = $region104
        $region103: #{tpu_custom_call.1} parent=87 // pred_region
          %s1634 = sand.u32 %s386, 1
          %s1635 = scalar_lea.sflag [#allocation9], %s1634
          %s1636 = sand.u32 %s386, 1
          %s1637 = scalar_lea.vmem [#allocation8], %s1636
          %1638 = dma.done %s1635, 16
        $region104: #{tpu_custom_call.1} parent=87 // pred_fallthru
          _
      $region88: #{tpu_custom_call.1} parent=5 // pred_fallthru
        _
    $region6: #{tpu_custom_call.1} parent=1 // loop_footer
      %s34 = sadd.s32 1, %s30
    $region7: #{tpu_custom_call.1} parent=1 // loop_footer_branch
      %29 = sbr.rel target = $region3
    $region8: #{tpu_custom_call.1} parent=1 // loop_exit
      _
    %1639 = vsyncpa [#allocation4], 1
    %s1640 = scalar_lea.sflag [#allocation4], 1
    %1641 = vsyncpa %s1640, 1
    %1642 = vsyncpa [#allocation6], 1
    %s1643 = scalar_lea.sflag [#allocation6], 1
    %1644 = vsyncpa %s1643, 1
    %1645 = vsyncpa [#allocation9], 1
    %s1646 = scalar_lea.sflag [#allocation9], 1
    %1647 = vsyncpa %s1646, 1

</llo_original>
